<compile_context>
chip_gen: v7x
topology: tpu7x:2x2x1
jax: 0.10.0
libtpu: 0.0.40
codegen_flags: <defaults>
</compile_context>

<pallas_src>
import math
import jax
import jax.numpy as jnp
from jax import lax
from jax.experimental import pallas as pl
from jax.experimental.pallas import tpu as pltpu


# ----------------------------------------------------------------------------
# Backbone kernel: one transformer encoder layer, gridded over sliding windows.
# ----------------------------------------------------------------------------
def _layernorm(x, g, b, eps=1e-5):
    mu = jnp.mean(x, axis=-1, keepdims=True)
    var = jnp.mean((x - mu) ** 2, axis=-1, keepdims=True)
    return (x - mu) * lax.rsqrt(var + eps) * g + b


def backbone_kernel(x_ref, bias_ref, wqkv_ref, wo_ref, w1_ref, b1_ref,
                    w2_ref, b2_ref, g1_ref, be1_ref, g2_ref, be2_ref, o_ref):
    x = x_ref[0]                          # (B, W, H)  f32
    bias = bias_ref[0]                    # (B, W)     additive key mask (0 / -1e9)
    B, W, H = x.shape

    x2 = x.reshape(B * W, H)
    # Fused Q/K/V: one (B*W,H) @ (H,3H) bf16 matmul, f32 accumulation.
    qkv = jnp.dot(x2.astype(jnp.bfloat16), wqkv_ref[...],
                  preferred_element_type=jnp.float32)            # (B*W, 3H)
    scale = 1.0 / math.sqrt(H)
    q = (qkv[:, 0 * H:1 * H] * scale).reshape(B, W, H).astype(jnp.bfloat16)
    k = qkv[:, 1 * H:2 * H].reshape(B, W, H).astype(jnp.bfloat16)
    v = qkv[:, 2 * H:3 * H].reshape(B, W, H).astype(jnp.bfloat16)

    s = jnp.einsum('bqd,bkd->bqk', q, k,
                   preferred_element_type=jnp.float32)           # (B, W, W)
    s = s + bias[:, None, :]                                     # mask keys

    s_max = jnp.max(s, axis=-1, keepdims=True)
    p = jnp.exp(s - s_max)
    # EUP reciprocal instead of a VALU divide.
    p = p * pl.reciprocal(jnp.sum(p, axis=-1, keepdims=True), approx=True)

    a = jnp.einsum('bqk,bkd->bqd', p.astype(jnp.bfloat16), v,
                   preferred_element_type=jnp.float32)           # (B, W, H)
    a = jnp.dot(a.reshape(B * W, H).astype(jnp.bfloat16), wo_ref[...],
                preferred_element_type=jnp.float32).reshape(B, W, H)

    h1 = _layernorm(x + a, g1_ref[...], be1_ref[...])

    ff = jnp.dot(h1.reshape(B * W, H).astype(jnp.bfloat16), w1_ref[...],
                 preferred_element_type=jnp.float32) + b1_ref[...]
    ff = jnp.maximum(ff, 0.0)
    ff = jnp.dot(ff.astype(jnp.bfloat16), w2_ref[...],
                 preferred_element_type=jnp.float32) + b2_ref[...]
    ff = ff.reshape(B, W, H)

    o_ref[0] = _layernorm(h1 + ff, g2_ref[...], be2_ref[...])


def backbone_forward_windows(x_windows, bias_windows, params):
    """x_windows: (N, B, W, H) f32 embeddings; bias_windows: (N, B, W) f32."""
    N, B, W, H = x_windows.shape
    F = params['w1'].shape[1]

    # Weight preprocessing (glue, once per call): fuse QKV, cast matmul weights
    # to bf16 (halves HBM/VMEM traffic; MXU-native on v6e/v7x).
    wqkv = jnp.concatenate([params['wq'], params['wk'], params['wv']],
                           axis=1).astype(jnp.bfloat16)          # (H, 3H)
    wo = params['wo'].astype(jnp.bfloat16)
    w1 = params['w1'].astype(jnp.bfloat16)
    w2 = params['w2'].astype(jnp.bfloat16)

    win_map = lambda i: (i, 0, 0, 0)
    const2 = lambda i: (0, 0)

    in_specs = [
        pl.BlockSpec((1, B, W, H), win_map),            # window activations
        pl.BlockSpec((1, B, W), lambda i: (i, 0, 0)),   # window mask bias
        pl.BlockSpec((H, 3 * H), const2),               # wqkv   (VMEM-resident)
        pl.BlockSpec((H, H), const2),                   # wo
        pl.BlockSpec((H, F), const2),                   # w1
        pl.BlockSpec((1, F), const2),                   # b1
        pl.BlockSpec((F, H), const2),                   # w2
        pl.BlockSpec((1, H), const2),                   # b2
        pl.BlockSpec((1, H), const2),                   # ln1 gamma
        pl.BlockSpec((1, H), const2),                   # ln1 beta
        pl.BlockSpec((1, H), const2),                   # ln2 gamma
        pl.BlockSpec((1, H), const2),                   # ln2 beta
    ]

    return pl.pallas_call(
        backbone_kernel,
        out_shape=jax.ShapeDtypeStruct((N, B, W, H), jnp.float32),
        grid=(N,),
        in_specs=in_specs,
        out_specs=pl.BlockSpec((1, B, W, H), win_map),
        compiler_params=pltpu.CompilerParams(
            dimension_semantics=("parallel",)),          # 2 TCs on v7x
    )(x_windows, bias_windows, wqkv, wo, w1, params['b1'], w2, params['b2'],
      params['g1'], params['be1'], params['g2'], params['be2'])


# ----------------------------------------------------------------------------
# Bidirectional LSTM kernel (PyTorch semantics, gates i,f,g,o).
# Time-major input (T, B, H); outputs written in place, no carried buffers.
# ----------------------------------------------------------------------------
def lstm_kernel(x_ref, wih_ref, bias_ref, whh_f_ref, whh_b_ref,
                out_f_ref, out_b_ref, gx_ref):
    T, B, H = x_ref.shape
    Hh = whh_f_ref.shape[0]
    G = 4 * Hh

    # Hoisted input projection for BOTH directions: one (T*B,H) @ (H,8*Hh)
    # matmul (biases pre-summed in the wrapper), stored in VMEM scratch.
    x2 = x_ref[...].reshape(T * B, H)
    gx = jnp.dot(x2.astype(jnp.bfloat16), wih_ref[...],
                 preferred_element_type=jnp.float32) + bias_ref[...]
    gx_ref[...] = gx.reshape(T, B, 2 * G)

    whh_f = whh_f_ref[...]                # (Hh, 4*Hh), pre-transposed
    whh_b = whh_b_ref[...]

    def gates_to_hc(gates, c):
        i = jax.nn.sigmoid(gates[:, 0 * Hh:1 * Hh])
        f = jax.nn.sigmoid(gates[:, 1 * Hh:2 * Hh])
        g = jnp.tanh(gates[:, 2 * Hh:3 * Hh])
        o = jax.nn.sigmoid(gates[:, 3 * Hh:4 * Hh])
        c_new = f * c + i * g
        h_new = o * jnp.tanh(c_new)
        return h_new, c_new

    def body(t, carry):
        h_f, c_f, h_b, c_b = carry
        tb = T - 1 - t
        # Only the unavoidable recurrent matmuls remain in the serial loop.
        gf = gx_ref[t][:, :G] + jnp.dot(h_f, whh_f,
                                        preferred_element_type=jnp.float32)
        gb = gx_ref[tb][:, G:] + jnp.dot(h_b, whh_b,
                                         preferred_element_type=jnp.float32)
        h_f, c_f = gates_to_hc(gf, c_f)
        h_b, c_b = gates_to_hc(gb, c_b)
        out_f_ref[t] = h_f                # in-place writes: no concat, no carry
        out_b_ref[tb] = h_b
        return h_f, c_f, h_b, c_b

    z = jnp.zeros((B, Hh), jnp.float32)
    lax.fori_loop(0, T, body, (z, z, z, z))


def lstm_forward(x, params):
    """x: (B, T, H) -> (B, T, H) with H = 2 * Hh (bidirectional concat)."""
    B, T, H = x.shape
    Hh = params['whh_f'].shape[1]

    xt = jnp.transpose(x, (1, 0, 2))                     # time-major (= permute(1,0,2))
    # Pre-transpose weights, pre-sum biases (glue, once per call).
    wih_all = jnp.concatenate([params['wih_f'].T, params['wih_b'].T],
                              axis=1).astype(jnp.bfloat16)        # (H, 8*Hh)
    bias_all = jnp.concatenate([params['bih_f'] + params['bhh_f'],
                                params['bih_b'] + params['bhh_b']],
                               axis=1)                            # (1, 8*Hh)
    whh_f_t = params['whh_f'].T                                   # (Hh, 4*Hh)
    whh_b_t = params['whh_b'].T

    vmem = pl.BlockSpec(memory_space=pltpu.MemorySpace.VMEM)
    out_f, out_b = pl.pallas_call(
        lstm_kernel,
        out_shape=(jax.ShapeDtypeStruct((T, B, Hh), jnp.float32),
                   jax.ShapeDtypeStruct((T, B, Hh), jnp.float32)),
        in_specs=[vmem] * 5,
        out_specs=(vmem, vmem),
        scratch_shapes=[pltpu.VMEM((T, B, 8 * Hh), jnp.float32)],
    )(xt, wih_all, bias_all, whh_f_t, whh_b_t)

    # (T,B,Hh) x2 -> (B, T, 2*Hh): equivalent to the reference's permute-back.
    return jnp.transpose(jnp.concatenate([out_f, out_b], axis=-1), (1, 0, 2))


# ----------------------------------------------------------------------------
# Full forward: sliding-window backbone + bidirectional LSTM.
# Replicates the PyTorch control flow; all windows run in ONE gridded call.
# ----------------------------------------------------------------------------
def sliding_window_transformer_forward(input_ids, attention_mask, params,
                                        window_size, edge_len):
    inner_len = window_size - 2 * edge_len
    B, L = input_ids.shape
    W = window_size
    emb = params['embedding']

    # Window schedule (static Python ints; same arithmetic as the PyTorch loop).
    if L <= W:
        segments = 0
        starts = [0]
    else:
        segments = (L - W) // inner_len
        if (L - W) % inner_len > edge_len:
            segments += 1
        elif segments == 0:
            segments += 1
        starts = [0] + [W - edge_len + (i - 1) * inner_len
                        for i in range(1, segments + 1)]

    # Pad so every window has the same static length W (padded keys get masked);
    # keeps one compiled kernel variant for all windows incl. the ragged last one.
    pad = starts[-1] + W - L
    ids_p = jnp.pad(input_ids, ((0, 0), (0, pad)))
    mask_p = jnp.pad(attention_mask, ((0, 0), (0, pad)))

    ids_w = jnp.stack([ids_p[:, s:s + W] for s in starts], axis=0)    # (N,B,W)
    mask_w = jnp.stack([mask_p[:, s:s + W] for s in starts], axis=0)  # (N,B,W)

    # Glue (XLA): embedding gather + additive mask bias, hoisted out of kernel.
    x_w = jnp.take(emb, ids_w, axis=0)                                # (N,B,W,H)
    bias_w = (1.0 - mask_w.astype(jnp.float32)) * (-1e9)              # (N,B,W)

    y_w = backbone_forward_windows(x_w, bias_w, params)               # (N,B,W,H)

    # Re-assemble the sequence exactly as the PyTorch loop does.
    if L <= W:
        x = y_w[0][:, :L]
    else:
        chunks = [y_w[0]]                                             # tokens [0, W)
        for i in range(1, segments + 1):
            if i == segments:
                valid = L - (starts[i] + edge_len)
                chunks.append(y_w[i][:, edge_len:edge_len + valid])
            else:
                chunks.append(y_w[i][:, edge_len:edge_len + inner_len])
        x = jnp.concatenate(chunks, axis=1)                           # (B, L, H)

    return lstm_forward(x, params)                                    # (B, L, H)


# ----------------------------------------------------------------------------
# Deterministic parameter init (synthetic "checkpoint").
# ----------------------------------------------------------------------------
def init_params(key, vocab, H, F, Hh):
    ks = jax.random.split(key, 16)
    n = lambda i, shape, s: jax.random.normal(ks[i], shape, jnp.float32) * s
    return dict(
        embedding=n(0, (vocab, H), 0.1),
        wq=n(1, (H, H), 0.05), wk=n(2, (H, H), 0.05),
        wv=n(3, (H, H), 0.05), wo=n(4, (H, H), 0.05),
        w1=n(5, (H, F), 0.05), b1=jnp.zeros((1, F), jnp.float32),
        w2=n(6, (F, H), 0.05), b2=jnp.zeros((1, H), jnp.float32),
        g1=jnp.ones((1, H), jnp.float32), be1=jnp.zeros((1, H), jnp.float32),
        g2=jnp.ones((1, H), jnp.float32), be2=jnp.zeros((1, H), jnp.float32),
        wih_f=n(7, (4 * Hh, H), 0.1), whh_f=n(8, (4 * Hh, Hh), 0.1),
        bih_f=n(9, (1, 4 * Hh), 0.1), bhh_f=n(10, (1, 4 * Hh), 0.1),
        wih_b=n(11, (4 * Hh, H), 0.1), whh_b=n(12, (4 * Hh, Hh), 0.1),
        bih_b=n(13, (1, 4 * Hh), 0.1), bhh_b=n(14, (1, 4 * Hh), 0.1),
    )


if __name__ == "__main__":
    # hidden_size=32 (LSTM hidden 16/direction), window_size=8, edge_len=2
    # (inner_len=4), seq_len=16 -> 3 sliding windows in one gridded kernel call.
    B, L, H, F, V = 2, 16, 32, 64, 64
    Hh = H // 2
    window_size, edge_len = 8, 2

    key = jax.random.PRNGKey(0)
    k_ids, k_par = jax.random.split(key)
    input_ids = jax.random.randint(k_ids, (B, L), 0, V, dtype=jnp.int32)
    attention_mask = jnp.ones((B, L), jnp.int32).at[1, 14:].set(0)

    params = init_params(k_par, V, H, F, Hh)

    out = sliding_window_transformer_forward(
        input_ids, attention_mask, params, window_size, edge_len)
    out = jax.block_until_ready(out)

    assert out.shape == (B, L, H), out.shape
    assert bool(jnp.all(jnp.isfinite(out)))
    print("KERNEL_OK")
</pallas_src>

<mosaic_0001>
module attributes {stable_mosaic.version = 11 : i64} {
  func.func @backbone_kernel(%arg0: i32, %arg1: memref<1x2x8x32xf32, #tpu.memory_space<vmem>>, %arg2: memref<1x2x8xf32, #tpu.memory_space<vmem>>, %arg3: memref<32x96xbf16, #tpu.memory_space<vmem>>, %arg4: memref<32x32xbf16, #tpu.memory_space<vmem>>, %arg5: memref<32x64xbf16, #tpu.memory_space<vmem>>, %arg6: memref<1x64xf32, #tpu.memory_space<vmem>>, %arg7: memref<64x32xbf16, #tpu.memory_space<vmem>>, %arg8: memref<1x32xf32, #tpu.memory_space<vmem>>, %arg9: memref<1x32xf32, #tpu.memory_space<vmem>>, %arg10: memref<1x32xf32, #tpu.memory_space<vmem>>, %arg11: memref<1x32xf32, #tpu.memory_space<vmem>>, %arg12: memref<1x32xf32, #tpu.memory_space<vmem>>, %arg13: memref<1x2x8x32xf32, #tpu.memory_space<vmem>>) attributes {dimension_semantics = [#tpu.dimension_semantics<parallel>], iteration_bounds = array<i64: 3>, scalar_prefetch = 0 : i64, scratch_operands = 0 : i64, tpu.core_type = #tpu.core_type<tc>, window_params = [{transform_indices = @transform_0, window_bounds = array<i64: 1, 2, 8, 32>}, {transform_indices = @transform_1, window_bounds = array<i64: 1, 2, 8>}, {pipeline_mode = #tpu.pipeline_mode<synchronous>, transform_indices = @transform_2, window_bounds = array<i64: 32, 96>}, {pipeline_mode = #tpu.pipeline_mode<synchronous>, transform_indices = @transform_3, window_bounds = array<i64: 32, 32>}, {pipeline_mode = #tpu.pipeline_mode<synchronous>, transform_indices = @transform_4, window_bounds = array<i64: 32, 64>}, {pipeline_mode = #tpu.pipeline_mode<synchronous>, transform_indices = @transform_5, window_bounds = array<i64: 1, 64>}, {pipeline_mode = #tpu.pipeline_mode<synchronous>, transform_indices = @transform_6, window_bounds = array<i64: 64, 32>}, {pipeline_mode = #tpu.pipeline_mode<synchronous>, transform_indices = @transform_7, window_bounds = array<i64: 1, 32>}, {pipeline_mode = #tpu.pipeline_mode<synchronous>, transform_indices = @transform_8, window_bounds = array<i64: 1, 32>}, {pipeline_mode = #tpu.pipeline_mode<synchronous>, transform_indices = @transform_9, window_bounds = array<i64: 1, 32>}, {pipeline_mode = #tpu.pipeline_mode<synchronous>, transform_indices = @transform_10, window_bounds = array<i64: 1, 32>}, {pipeline_mode = #tpu.pipeline_mode<synchronous>, transform_indices = @transform_11, window_bounds = array<i64: 1, 32>}, {transform_indices = @transform_12, window_bounds = array<i64: 1, 2, 8, 32>}]} {
    %c0 = arith.constant 0 : index
    %c0_0 = arith.constant 0 : index
    %c0_1 = arith.constant 0 : index
    %c0_2 = arith.constant 0 : index
    %0 = vector.load %arg1[%c0, %c0_0, %c0_1, %c0_2] : memref<1x2x8x32xf32, #tpu.memory_space<vmem>>, vector<1x2x8x32xf32>
    %1 = vector.shape_cast %0 : vector<1x2x8x32xf32> to vector<2x8x32xf32>
    %c0_3 = arith.constant 0 : index
    %c0_4 = arith.constant 0 : index
    %c0_5 = arith.constant 0 : index
    %2 = vector.load %arg2[%c0_3, %c0_4, %c0_5] : memref<1x2x8xf32, #tpu.memory_space<vmem>>, vector<1x2x8xf32>
    %3 = vector.shape_cast %2 : vector<1x2x8xf32> to vector<2x8xf32>
    %4 = vector.shape_cast %1 : vector<2x8x32xf32> to vector<16x32xf32>
    %5 = arith.truncf %4 : vector<16x32xf32> to vector<16x32xbf16>
    %c0_6 = arith.constant 0 : index
    %c0_7 = arith.constant 0 : index
    %6 = vector.load %arg3[%c0_6, %c0_7] : memref<32x96xbf16, #tpu.memory_space<vmem>>, vector<32x96xbf16>
    %cst = arith.constant dense<0.000000e+00> : vector<16x96xf32>
    %7 = tpu.matmul %5, %6, %cst {dimension_numbers = #tpu.dot_dimension_numbers<[1], [0], [0], [1], [0, 0, 1, 1], [], []>} : vector<16x32xbf16>, vector<32x96xbf16>, vector<16x96xf32> -> vector<16x96xf32>
    %8 = vector.extract_strided_slice %7 {offsets = [0, 0], sizes = [16, 32], strides = [1, 1]} : vector<16x96xf32> to vector<16x32xf32>
    %cst_8 = arith.constant 0.176776692 : f32
    %9 = vector.broadcast %cst_8 : f32 to vector<16x32xf32>
    %10 = arith.mulf %8, %9 : vector<16x32xf32>
    %11 = vector.shape_cast %10 : vector<16x32xf32> to vector<2x8x32xf32>
    %12 = arith.truncf %11 : vector<2x8x32xf32> to vector<2x8x32xbf16>
    %13 = vector.extract_strided_slice %7 {offsets = [0, 32], sizes = [16, 32], strides = [1, 1]} : vector<16x96xf32> to vector<16x32xf32>
    %14 = vector.shape_cast %13 : vector<16x32xf32> to vector<2x8x32xf32>
    %15 = arith.truncf %14 : vector<2x8x32xf32> to vector<2x8x32xbf16>
    %16 = vector.extract_strided_slice %7 {offsets = [0, 64], sizes = [16, 32], strides = [1, 1]} : vector<16x96xf32> to vector<16x32xf32>
    %17 = vector.shape_cast %16 : vector<16x32xf32> to vector<2x8x32xf32>
    %18 = arith.truncf %17 : vector<2x8x32xf32> to vector<2x8x32xbf16>
    "tpu.trace_start"() <{level = 10 : i32, message = "bqd,bkd->bqk"}> : () -> ()
    %cst_9 = arith.constant dense<0.000000e+00> : vector<2x8x8xf32>
    %19 = tpu.matmul %12, %15, %cst_9 {dimension_numbers = #tpu.dot_dimension_numbers<[2], [2], [1], [1], [0, 0, 0, 1, 1, 1], [0], [0]>} : vector<2x8x32xbf16>, vector<2x8x32xbf16>, vector<2x8x8xf32> -> vector<2x8x8xf32>
    "tpu.trace_stop"() : () -> ()
    %20 = vector.shape_cast %3 : vector<2x8xf32> to vector<2x1x8xf32>
    %21 = vector.broadcast %20 : vector<2x1x8xf32> to vector<2x8x8xf32>
    %22 = arith.addf %19, %21 : vector<2x8x8xf32>
    %cst_10 = arith.constant dense<0xFF800000> : vector<2x8xf32>
    %23 = vector.multi_reduction <maximumf>, %22, %cst_10 [2] : vector<2x8x8xf32> to vector<2x8xf32>
    %24 = vector.shape_cast %23 : vector<2x8xf32> to vector<2x8x1xf32>
    %25 = vector.broadcast %24 : vector<2x8x1xf32> to vector<2x8x8xf32>
    %26 = arith.subf %22, %25 : vector<2x8x8xf32>
    %27 = math.exp %26 : vector<2x8x8xf32>
    %cst_11 = arith.constant dense<0.000000e+00> : vector<2x8xf32>
    %28 = vector.multi_reduction <add>, %27, %cst_11 [2] : vector<2x8x8xf32> to vector<2x8xf32>
    %29 = vector.shape_cast %28 : vector<2x8xf32> to vector<2x8x1xf32>
    %30 = tpu.reciprocal %29 {approx = true} : vector<2x8x1xf32> -> vector<2x8x1xf32>
    %31 = vector.broadcast %30 : vector<2x8x1xf32> to vector<2x8x8xf32>
    %32 = arith.mulf %27, %31 : vector<2x8x8xf32>
    %33 = arith.truncf %32 : vector<2x8x8xf32> to vector<2x8x8xbf16>
    "tpu.trace_start"() <{level = 10 : i32, message = "bqk,bkd->bqd"}> : () -> ()
    %cst_12 = arith.constant dense<0.000000e+00> : vector<2x8x32xf32>
    %34 = tpu.matmul %33, %18, %cst_12 {dimension_numbers = #tpu.dot_dimension_numbers<[2], [1], [1], [2], [0, 0, 0, 1, 1, 2], [0], [0]>} : vector<2x8x8xbf16>, vector<2x8x32xbf16>, vector<2x8x32xf32> -> vector<2x8x32xf32>
    "tpu.trace_stop"() : () -> ()
    %35 = vector.shape_cast %34 : vector<2x8x32xf32> to vector<16x32xf32>
    %36 = arith.truncf %35 : vector<16x32xf32> to vector<16x32xbf16>
    %c0_13 = arith.constant 0 : index
    %c0_14 = arith.constant 0 : index
    %37 = vector.load %arg4[%c0_13, %c0_14] : memref<32x32xbf16, #tpu.memory_space<vmem>>, vector<32x32xbf16>
    %cst_15 = arith.constant dense<0.000000e+00> : vector<16x32xf32>
    %38 = tpu.matmul %36, %37, %cst_15 {dimension_numbers = #tpu.dot_dimension_numbers<[1], [0], [0], [1], [0, 0, 1, 1], [], []>} : vector<16x32xbf16>, vector<32x32xbf16>, vector<16x32xf32> -> vector<16x32xf32>
    %39 = vector.shape_cast %38 : vector<16x32xf32> to vector<2x8x32xf32>
    %40 = arith.addf %1, %39 : vector<2x8x32xf32>
    %c0_16 = arith.constant 0 : index
    %c0_17 = arith.constant 0 : index
    %41 = vector.load %arg9[%c0_16, %c0_17] : memref<1x32xf32, #tpu.memory_space<vmem>>, vector<1x32xf32>
    %c0_18 = arith.constant 0 : index
    %c0_19 = arith.constant 0 : index
    %42 = vector.load %arg10[%c0_18, %c0_19] : memref<1x32xf32, #tpu.memory_space<vmem>>, vector<1x32xf32>
    %cst_20 = arith.constant dense<0.000000e+00> : vector<2x8xf32>
    %43 = vector.multi_reduction <add>, %40, %cst_20 [2] : vector<2x8x32xf32> to vector<2x8xf32>
    %44 = vector.shape_cast %43 : vector<2x8xf32> to vector<2x8x1xf32>
    %cst_21 = arith.constant 3.200000e+01 : f32
    %45 = vector.broadcast %cst_21 : f32 to vector<2x8x1xf32>
    %46 = arith.divf %44, %45 : vector<2x8x1xf32>
    %47 = vector.broadcast %46 : vector<2x8x1xf32> to vector<2x8x32xf32>
    %48 = arith.subf %40, %47 : vector<2x8x32xf32>
    %49 = arith.mulf %48, %48 : vector<2x8x32xf32>
    %cst_22 = arith.constant dense<0.000000e+00> : vector<2x8xf32>
    %50 = vector.multi_reduction <add>, %49, %cst_22 [2] : vector<2x8x32xf32> to vector<2x8xf32>
    %51 = vector.shape_cast %50 : vector<2x8xf32> to vector<2x8x1xf32>
    %cst_23 = arith.constant 3.200000e+01 : f32
    %52 = vector.broadcast %cst_23 : f32 to vector<2x8x1xf32>
    %53 = arith.divf %51, %52 : vector<2x8x1xf32>
    %54 = vector.broadcast %46 : vector<2x8x1xf32> to vector<2x8x32xf32>
    %55 = arith.subf %40, %54 : vector<2x8x32xf32>
    %cst_24 = arith.constant 9.99999974E-6 : f32
    %56 = vector.broadcast %cst_24 : f32 to vector<2x8x1xf32>
    %57 = arith.addf %53, %56 : vector<2x8x1xf32>
    %58 = math.rsqrt %57 : vector<2x8x1xf32>
    %59 = vector.broadcast %58 : vector<2x8x1xf32> to vector<2x8x32xf32>
    %60 = arith.mulf %55, %59 : vector<2x8x32xf32>
    %61 = vector.shape_cast %41 : vector<1x32xf32> to vector<1x1x32xf32>
    %62 = vector.broadcast %61 : vector<1x1x32xf32> to vector<2x8x32xf32>
    %63 = arith.mulf %60, %62 : vector<2x8x32xf32>
    %64 = vector.shape_cast %42 : vector<1x32xf32> to vector<1x1x32xf32>
    %65 = vector.broadcast %64 : vector<1x1x32xf32> to vector<2x8x32xf32>
    %66 = arith.addf %63, %65 : vector<2x8x32xf32>
    %67 = vector.shape_cast %66 : vector<2x8x32xf32> to vector<16x32xf32>
    %68 = arith.truncf %67 : vector<16x32xf32> to vector<16x32xbf16>
    %c0_25 = arith.constant 0 : index
    %c0_26 = arith.constant 0 : index
    %69 = vector.load %arg5[%c0_25, %c0_26] : memref<32x64xbf16, #tpu.memory_space<vmem>>, vector<32x64xbf16>
    %cst_27 = arith.constant dense<0.000000e+00> : vector<16x64xf32>
    %70 = tpu.matmul %68, %69, %cst_27 {dimension_numbers = #tpu.dot_dimension_numbers<[1], [0], [0], [1], [0, 0, 1, 1], [], []>} : vector<16x32xbf16>, vector<32x64xbf16>, vector<16x64xf32> -> vector<16x64xf32>
    %c0_28 = arith.constant 0 : index
    %c0_29 = arith.constant 0 : index
    %71 = vector.load %arg6[%c0_28, %c0_29] : memref<1x64xf32, #tpu.memory_space<vmem>>, vector<1x64xf32>
    %72 = vector.broadcast %71 : vector<1x64xf32> to vector<16x64xf32>
    %73 = arith.addf %70, %72 : vector<16x64xf32>
    %cst_30 = arith.constant 0.000000e+00 : f32
    %74 = vector.broadcast %cst_30 : f32 to vector<16x64xf32>
    %75 = arith.maximumf %73, %74 : vector<16x64xf32>
    %76 = arith.truncf %75 : vector<16x64xf32> to vector<16x64xbf16>
    %c0_31 = arith.constant 0 : index
    %c0_32 = arith.constant 0 : index
    %77 = vector.load %arg7[%c0_31, %c0_32] : memref<64x32xbf16, #tpu.memory_space<vmem>>, vector<64x32xbf16>
    %cst_33 = arith.constant dense<0.000000e+00> : vector<16x32xf32>
    %78 = tpu.matmul %76, %77, %cst_33 {dimension_numbers = #tpu.dot_dimension_numbers<[1], [0], [0], [1], [0, 0, 1, 1], [], []>} : vector<16x64xbf16>, vector<64x32xbf16>, vector<16x32xf32> -> vector<16x32xf32>
    %c0_34 = arith.constant 0 : index
    %c0_35 = arith.constant 0 : index
    %79 = vector.load %arg8[%c0_34, %c0_35] : memref<1x32xf32, #tpu.memory_space<vmem>>, vector<1x32xf32>
    %80 = vector.broadcast %79 : vector<1x32xf32> to vector<16x32xf32>
    %81 = arith.addf %78, %80 : vector<16x32xf32>
    %82 = vector.shape_cast %81 : vector<16x32xf32> to vector<2x8x32xf32>
    %83 = arith.addf %66, %82 : vector<2x8x32xf32>
    %c0_36 = arith.constant 0 : index
    %c0_37 = arith.constant 0 : index
    %84 = vector.load %arg11[%c0_36, %c0_37] : memref<1x32xf32, #tpu.memory_space<vmem>>, vector<1x32xf32>
    %c0_38 = arith.constant 0 : index
    %c0_39 = arith.constant 0 : index
    %85 = vector.load %arg12[%c0_38, %c0_39] : memref<1x32xf32, #tpu.memory_space<vmem>>, vector<1x32xf32>
    %cst_40 = arith.constant dense<0.000000e+00> : vector<2x8xf32>
    %86 = vector.multi_reduction <add>, %83, %cst_40 [2] : vector<2x8x32xf32> to vector<2x8xf32>
    %87 = vector.shape_cast %86 : vector<2x8xf32> to vector<2x8x1xf32>
    %cst_41 = arith.constant 3.200000e+01 : f32
    %88 = vector.broadcast %cst_41 : f32 to vector<2x8x1xf32>
    %89 = arith.divf %87, %88 : vector<2x8x1xf32>
    %90 = vector.broadcast %89 : vector<2x8x1xf32> to vector<2x8x32xf32>
    %91 = arith.subf %83, %90 : vector<2x8x32xf32>
    %92 = arith.mulf %91, %91 : vector<2x8x32xf32>
    %cst_42 = arith.constant dense<0.000000e+00> : vector<2x8xf32>
    %93 = vector.multi_reduction <add>, %92, %cst_42 [2] : vector<2x8x32xf32> to vector<2x8xf32>
    %94 = vector.shape_cast %93 : vector<2x8xf32> to vector<2x8x1xf32>
    %cst_43 = arith.constant 3.200000e+01 : f32
    %95 = vector.broadcast %cst_43 : f32 to vector<2x8x1xf32>
    %96 = arith.divf %94, %95 : vector<2x8x1xf32>
    %97 = vector.broadcast %89 : vector<2x8x1xf32> to vector<2x8x32xf32>
    %98 = arith.subf %83, %97 : vector<2x8x32xf32>
    %cst_44 = arith.constant 9.99999974E-6 : f32
    %99 = vector.broadcast %cst_44 : f32 to vector<2x8x1xf32>
    %100 = arith.addf %96, %99 : vector<2x8x1xf32>
    %101 = math.rsqrt %100 : vector<2x8x1xf32>
    %102 = vector.broadcast %101 : vector<2x8x1xf32> to vector<2x8x32xf32>
    %103 = arith.mulf %98, %102 : vector<2x8x32xf32>
    %104 = vector.shape_cast %84 : vector<1x32xf32> to vector<1x1x32xf32>
    %105 = vector.broadcast %104 : vector<1x1x32xf32> to vector<2x8x32xf32>
    %106 = arith.mulf %103, %105 : vector<2x8x32xf32>
    %107 = vector.shape_cast %85 : vector<1x32xf32> to vector<1x1x32xf32>
    %108 = vector.broadcast %107 : vector<1x1x32xf32> to vector<2x8x32xf32>
    %109 = arith.addf %106, %108 : vector<2x8x32xf32>
    %c0_45 = arith.constant 0 : index
    %c0_46 = arith.constant 0 : index
    %c0_47 = arith.constant 0 : index
    %c0_48 = arith.constant 0 : index
    %110 = vector.load %arg13[%c0_45, %c0_46, %c0_47, %c0_48] : memref<1x2x8x32xf32, #tpu.memory_space<vmem>>, vector<1x2x8x32xf32>
    %111 = vector.shape_cast %110 : vector<1x2x8x32xf32> to vector<2x8x32xf32>
    %112 = vector.shape_cast %109 : vector<2x8x32xf32> to vector<1x2x8x32xf32>
    tpu.vector_store %arg13[%c0_45, %c0_46, %c0_47, %c0_48], %112 {strides = array<i32>} : memref<1x2x8x32xf32, #tpu.memory_space<vmem>>, vector<1x2x8x32xf32>,
    return
  }
  func.func @transform_0(%arg0: i32) -> (i32, i32, i32, i32) {
    %c0_i32 = arith.constant 0 : i32
    %c0_i32_0 = arith.constant 0 : i32
    %c0_i32_1 = arith.constant 0 : i32
    %c0_i32_2 = arith.constant 0 : i32
    return %arg0, %c0_i32, %c0_i32_0, %c0_i32_1 : i32, i32, i32, i32
  }
  func.func @transform_1(%arg0: i32) -> (i32, i32, i32) {
    %c0_i32 = arith.constant 0 : i32
    %c0_i32_0 = arith.constant 0 : i32
    %c0_i32_1 = arith.constant 0 : i32
    return %arg0, %c0_i32, %c0_i32_0 : i32, i32, i32
  }
  func.func @transform_2(%arg0: i32) -> (i32, i32) {
    %c0_i32 = arith.constant 0 : i32
    %c0_i32_0 = arith.constant 0 : i32
    %c0_i32_1 = arith.constant 0 : i32
    return %c0_i32, %c0_i32_0 : i32, i32
  }
  func.func @transform_3(%arg0: i32) -> (i32, i32) {
    %c0_i32 = arith.constant 0 : i32
    %c0_i32_0 = arith.constant 0 : i32
    %c0_i32_1 = arith.constant 0 : i32
    return %c0_i32, %c0_i32_0 : i32, i32
  }
  func.func @transform_4(%arg0: i32) -> (i32, i32) {
    %c0_i32 = arith.constant 0 : i32
    %c0_i32_0 = arith.constant 0 : i32
    %c0_i32_1 = arith.constant 0 : i32
    return %c0_i32, %c0_i32_0 : i32, i32
  }
  func.func @transform_5(%arg0: i32) -> (i32, i32) {
    %c0_i32 = arith.constant 0 : i32
    %c0_i32_0 = arith.constant 0 : i32
    %c0_i32_1 = arith.constant 0 : i32
    return %c0_i32, %c0_i32_0 : i32, i32
  }
  func.func @transform_6(%arg0: i32) -> (i32, i32) {
    %c0_i32 = arith.constant 0 : i32
    %c0_i32_0 = arith.constant 0 : i32
    %c0_i32_1 = arith.constant 0 : i32
    return %c0_i32, %c0_i32_0 : i32, i32
  }
  func.func @transform_7(%arg0: i32) -> (i32, i32) {
    %c0_i32 = arith.constant 0 : i32
    %c0_i32_0 = arith.constant 0 : i32
    %c0_i32_1 = arith.constant 0 : i32
    return %c0_i32, %c0_i32_0 : i32, i32
  }
  func.func @transform_8(%arg0: i32) -> (i32, i32) {
    %c0_i32 = arith.constant 0 : i32
    %c0_i32_0 = arith.constant 0 : i32
    %c0_i32_1 = arith.constant 0 : i32
    return %c0_i32, %c0_i32_0 : i32, i32
  }
  func.func @transform_9(%arg0: i32) -> (i32, i32) {
    %c0_i32 = arith.constant 0 : i32
    %c0_i32_0 = arith.constant 0 : i32
    %c0_i32_1 = arith.constant 0 : i32
    return %c0_i32, %c0_i32_0 : i32, i32
  }
  func.func @transform_10(%arg0: i32) -> (i32, i32) {
    %c0_i32 = arith.constant 0 : i32
    %c0_i32_0 = arith.constant 0 : i32
    %c0_i32_1 = arith.constant 0 : i32
    return %c0_i32, %c0_i32_0 : i32, i32
  }
  func.func @transform_11(%arg0: i32) -> (i32, i32) {
    %c0_i32 = arith.constant 0 : i32
    %c0_i32_0 = arith.constant 0 : i32
    %c0_i32_1 = arith.constant 0 : i32
    return %c0_i32, %c0_i32_0 : i32, i32
  }
  func.func @transform_12(%arg0: i32) -> (i32, i32, i32, i32) {
    %c0_i32 = arith.constant 0 : i32
    %c0_i32_0 = arith.constant 0 : i32
    %c0_i32_1 = arith.constant 0 : i32
    %c0_i32_2 = arith.constant 0 : i32
    return %arg0, %c0_i32, %c0_i32_0, %c0_i32_1 : i32, i32, i32, i32
  }
}

</mosaic_0001>

<llo_original>
// kernel: tpu_custom_call.1
$region0: #{tpu_custom_call.1}
  #allocation0 [shape = 'u32[]', space=smem, size = 0x4, offset = 0x4, fixed_abs, tag = 'smem constant byte address 0x4 - core index']
  #allocation1 [shape = 'u32[144,128]{1,0:T(1,128)}', space=vmem, size = 0x12000, scoped, tag = 'internal scratch']
  %s0 = inlined_call_operand.vmem [shape: f32[3,2,8,32], index: 0, kind: input, shape index: {}]
  %s1 = inlined_call_operand.hbm [shape: f32[3,2,8], index: 1, kind: input, shape index: {}]
  %s2 = inlined_call_operand.hbm [shape: bf16[32,96], index: 2, kind: input, shape index: {}]
  %s3 = inlined_call_operand.hbm [shape: bf16[32,32], index: 3, kind: input, shape index: {}]
  %s4 = inlined_call_operand.hbm [shape: bf16[32,64], index: 4, kind: input, shape index: {}]
  %s5 = inlined_call_operand.vmem [shape: f32[1,64], index: 5, kind: input, shape index: {}]
  %s6 = inlined_call_operand.vmem [shape: bf16[64,32], index: 6, kind: input, shape index: {}]
  %s7 = inlined_call_operand.vmem [shape: f32[1,32], index: 7, kind: input, shape index: {}]
  %s8 = inlined_call_operand.vmem [shape: f32[1,32], index: 8, kind: input, shape index: {}]
  %s9 = inlined_call_operand.vmem [shape: f32[1,32], index: 9, kind: input, shape index: {}]
  %s10 = inlined_call_operand.vmem [shape: f32[1,32], index: 10, kind: input, shape index: {}]
  %s11 = inlined_call_operand.vmem [shape: f32[1,32], index: 11, kind: input, shape index: {}]
  %s12 = inlined_call_operand.hbm [shape: f32[3,2,8,32], index: 12, kind: output, shape index: {}]
  %s13 = sld [smem:[#allocation0]]
  $region97: #{tpu_custom_call.1} parent=0
    _
  %s15 = ssub.s32 1, %s13
  %s16 = scalar_select 0, %s15, %s13
  $region1: #{tpu_custom_call.1} parent=0
    #allocation2 [shape = 'u8[2048]{0}', space=vmem, size = 0x800, scoped, tag = 'input window, operand 1']
    #allocation3 [shape = 's32[2]{0}', space=sflag, size = 0x8, scoped, tag = 'scoped memory for tpu_custom_call.1']
    #allocation4 [shape = 's32[2]{0}', space=sflag, size = 0x8, scoped, tag = 'scoped memory for tpu_custom_call.1']
    #allocation5 [shape = 'u8[8192]{0}', space=vmem, size = 0x2000, scoped, tag = 'input window, operand 2, single buffered']
    #allocation6 [shape = 's32[1]{0}', space=sflag, size = 0x4, scoped, tag = 'scoped memory for tpu_custom_call.1']
    #allocation7 [shape = 'u8[8192]{0}', space=vmem, size = 0x2000, scoped, tag = 'input window, operand 3, single buffered']
    #allocation8 [shape = 'u8[8192]{0}', space=vmem, size = 0x2000, scoped, tag = 'input window, operand 4, single buffered']
    #allocation9 [shape = 's32[1]{0}', space=sflag, size = 0x4, scoped, tag = 'scoped memory for tpu_custom_call.1']
    #allocation10 [shape = 'u8[16384]{0}', space=vmem, size = 0x4000, scoped, tag = 'output window, operand 0']
    %17 = vsyncpa [#allocation3], 0
    %s18 = scalar_lea.sflag [#allocation3], 1
    %19 = vsyncpa %s18, 0
    %20 = vsyncpa [#allocation6], 0
    %21 = vsyncpa [#allocation9], 0
    %22 = vsyncpa [#allocation4], 0
    %s23 = scalar_lea.sflag [#allocation4], 1
    %24 = vsyncpa %s23, 0
    loop: start=0, step=1, limit=5
    $region2: #{tpu_custom_call.1} parent=1 // loop_pre_header
      _
    $region3: #{tpu_custom_call.1} parent=1 // loop_header
      %s26 = sphi 0, %s30
      %p27 = scmp.ge.s32.totalorder %s26, 5
      %s36 = sphi 0, %s38
      %s39 = sphi 0, %s36
      %s40 = sphi 0, %s39
      %s56 = sphi 0, %s40
      %s62 = sphi 0, %s64
      %s65 = sphi 0, %s62
      %s66 = sphi 0, %s65
      %s82 = sphi 0, %s66
      %s86 = sphi 0, %s86
      %s88 = sphi 0, %s86
      %s89 = sphi 0, %s88
      %s103 = sphi 0, %s89
      %s107 = sphi 0, %s107
      %s109 = sphi 0, %s107
      %s110 = sphi 0, %s109
      %s124 = sphi 0, %s110
      %s128 = sphi 0, %s128
      %s130 = sphi 0, %s128
      %s131 = sphi 0, %s130
      %s145 = sphi 0, %s131
      %s149 = sphi 0, %s149
      %s151 = sphi 0, %s149
      %s152 = sphi 0, %s151
      %s166 = sphi 0, %s152
      %s170 = sphi 0, %s170
      %s172 = sphi 0, %s170
      %s173 = sphi 0, %s172
      %s187 = sphi 0, %s173
      %s191 = sphi 0, %s191
      %s193 = sphi 0, %s191
      %s194 = sphi 0, %s193
      %s208 = sphi 0, %s194
      %s212 = sphi 0, %s212
      %s214 = sphi 0, %s212
      %s215 = sphi 0, %s214
      %s229 = sphi 0, %s215
      %s233 = sphi 0, %s233
      %s235 = sphi 0, %s233
      %s236 = sphi 0, %s235
      %s250 = sphi 0, %s236
      %s254 = sphi 0, %s254
      %s256 = sphi 0, %s254
      %s257 = sphi 0, %s256
      %s271 = sphi 0, %s257
      %s275 = sphi 0, %s275
      %s277 = sphi 0, %s275
      %s278 = sphi 0, %s277
      %s292 = sphi 0, %s278
      %s298 = sphi 0, %s300
      %s301 = sphi 0, %s298
      %s302 = sphi 0, %s301
      %s318 = sphi 0, %s302
    $region4: #{tpu_custom_call.1} parent=1 // loop_header_branch
      %29 = sbr.rel (%p27) target = $region8
    $region5: #{tpu_custom_call.1} parent=1 // loop_body
      %s31 = ssub.s32 %s26, 1
      %s32 = ssub.s32 %s26, 2
      %s33 = sadd.s32 %s26, 1
      %s34 = ssub.s32 %s26, %s33
      %p35 = scmp.eq.s32.totalorder %s34, 0
      %s37 = sadd.s32 %s36, 1
      %s38 = scalar_select %p35, %s36, %s37
      %p41 = pneg %p35
      %p42 = scmp.eq.s32.totalorder %s26, 2
      %p43 = por %p41, %p42
      %p44 = scmp.ne.s32.totalorder %s36, %s39
      %p45 = scmp.eq.s32.totalorder %s26, 0
      %p46 = por %p44, %p45
      %p47 = scmp.ne.s32.totalorder %s36, %s39
      %p48 = scmp.eq.s32.totalorder %s31, 2
      %p49 = por %p47, %p48
      %p50 = scmp.ne.s32.totalorder %s39, %s40
      %p51 = scmp.eq.s32.totalorder %s31, 0
      %p52 = por %p50, %p51
      %p53 = scmp.ne.s32.totalorder %s39, %s40
      %p54 = scmp.eq.s32.totalorder %s32, 2
      %p55 = por %p53, %p54
      %p57 = scmp.ne.s32.totalorder %s40, %s56
      %p58 = scmp.eq.s32.totalorder %s32, 0
      %p59 = por %p57, %p58
      %s60 = ssub.s32 %s26, %s33
      %p61 = scmp.eq.s32.totalorder %s60, 0
      %s63 = sadd.s32 %s62, 1
      %s64 = scalar_select %p61, %s62, %s63
      %p67 = pneg %p61
      %p68 = scmp.eq.s32.totalorder %s26, 2
      %p69 = por %p67, %p68
      %p70 = scmp.ne.s32.totalorder %s62, %s65
      %p71 = scmp.eq.s32.totalorder %s26, 0
      %p72 = por %p70, %p71
      %p73 = scmp.ne.s32.totalorder %s62, %s65
      %p74 = scmp.eq.s32.totalorder %s31, 2
      %p75 = por %p73, %p74
      %p76 = scmp.ne.s32.totalorder %s65, %s66
      %p77 = scmp.eq.s32.totalorder %s31, 0
      %p78 = por %p76, %p77
      %p79 = scmp.ne.s32.totalorder %s65, %s66
      %p80 = scmp.eq.s32.totalorder %s32, 2
      %p81 = por %p79, %p80
      %p83 = scmp.ne.s32.totalorder %s66, %s82
      %p84 = scmp.eq.s32.totalorder %s32, 0
      %p85 = por %p83, %p84
      %s87 = sadd.s32 %s86, 1
      %p90 = scmp.eq.s32.totalorder %s26, 2
      %p91 = scmp.ne.s32.totalorder %s86, %s88
      %p92 = scmp.eq.s32.totalorder %s26, 0
      %p93 = por %p91, %p92
      %p94 = scmp.ne.s32.totalorder %s86, %s88
      %p95 = scmp.eq.s32.totalorder %s31, 2
      %p96 = por %p94, %p95
      %p97 = scmp.ne.s32.totalorder %s88, %s89
      %p98 = scmp.eq.s32.totalorder %s31, 0
      %p99 = por %p97, %p98
      %p100 = scmp.ne.s32.totalorder %s88, %s89
      %p101 = scmp.eq.s32.totalorder %s32, 2
      %p102 = por %p100, %p101
      %p104 = scmp.ne.s32.totalorder %s89, %s103
      %p105 = scmp.eq.s32.totalorder %s32, 0
      %p106 = por %p104, %p105
      %s108 = sadd.s32 %s107, 1
      %p111 = scmp.eq.s32.totalorder %s26, 2
      %p112 = scmp.ne.s32.totalorder %s107, %s109
      %p113 = scmp.eq.s32.totalorder %s26, 0
      %p114 = por %p112, %p113
      %p115 = scmp.ne.s32.totalorder %s107, %s109
      %p116 = scmp.eq.s32.totalorder %s31, 2
      %p117 = por %p115, %p116
      %p118 = scmp.ne.s32.totalorder %s109, %s110
      %p119 = scmp.eq.s32.totalorder %s31, 0
      %p120 = por %p118, %p119
      %p121 = scmp.ne.s32.totalorder %s109, %s110
      %p122 = scmp.eq.s32.totalorder %s32, 2
      %p123 = por %p121, %p122
      %p125 = scmp.ne.s32.totalorder %s110, %s124
      %p126 = scmp.eq.s32.totalorder %s32, 0
      %p127 = por %p125, %p126
      %s129 = sadd.s32 %s128, 1
      %p132 = scmp.eq.s32.totalorder %s26, 2
      %p133 = scmp.ne.s32.totalorder %s128, %s130
      %p134 = scmp.eq.s32.totalorder %s26, 0
      %p135 = por %p133, %p134
      %p136 = scmp.ne.s32.totalorder %s128, %s130
      %p137 = scmp.eq.s32.totalorder %s31, 2
      %p138 = por %p136, %p137
      %p139 = scmp.ne.s32.totalorder %s130, %s131
      %p140 = scmp.eq.s32.totalorder %s31, 0
      %p141 = por %p139, %p140
      %p142 = scmp.ne.s32.totalorder %s130, %s131
      %p143 = scmp.eq.s32.totalorder %s32, 2
      %p144 = por %p142, %p143
      %p146 = scmp.ne.s32.totalorder %s131, %s145
      %p147 = scmp.eq.s32.totalorder %s32, 0
      %p148 = por %p146, %p147
      %s150 = sadd.s32 %s149, 1
      %p153 = scmp.eq.s32.totalorder %s26, 2
      %p154 = scmp.ne.s32.totalorder %s149, %s151
      %p155 = scmp.eq.s32.totalorder %s26, 0
      %p156 = por %p154, %p155
      %p157 = scmp.ne.s32.totalorder %s149, %s151
      %p158 = scmp.eq.s32.totalorder %s31, 2
      %p159 = por %p157, %p158
      %p160 = scmp.ne.s32.totalorder %s151, %s152
      %p161 = scmp.eq.s32.totalorder %s31, 0
      %p162 = por %p160, %p161
      %p163 = scmp.ne.s32.totalorder %s151, %s152
      %p164 = scmp.eq.s32.totalorder %s32, 2
      %p165 = por %p163, %p164
      %p167 = scmp.ne.s32.totalorder %s152, %s166
      %p168 = scmp.eq.s32.totalorder %s32, 0
      %p169 = por %p167, %p168
      %s171 = sadd.s32 %s170, 1
      %p174 = scmp.eq.s32.totalorder %s26, 2
      %p175 = scmp.ne.s32.totalorder %s170, %s172
      %p176 = scmp.eq.s32.totalorder %s26, 0
      %p177 = por %p175, %p176
      %p178 = scmp.ne.s32.totalorder %s170, %s172
      %p179 = scmp.eq.s32.totalorder %s31, 2
      %p180 = por %p178, %p179
      %p181 = scmp.ne.s32.totalorder %s172, %s173
      %p182 = scmp.eq.s32.totalorder %s31, 0
      %p183 = por %p181, %p182
      %p184 = scmp.ne.s32.totalorder %s172, %s173
      %p185 = scmp.eq.s32.totalorder %s32, 2
      %p186 = por %p184, %p185
      %p188 = scmp.ne.s32.totalorder %s173, %s187
      %p189 = scmp.eq.s32.totalorder %s32, 0
      %p190 = por %p188, %p189
      %s192 = sadd.s32 %s191, 1
      %p195 = scmp.eq.s32.totalorder %s26, 2
      %p196 = scmp.ne.s32.totalorder %s191, %s193
      %p197 = scmp.eq.s32.totalorder %s26, 0
      %p198 = por %p196, %p197
      %p199 = scmp.ne.s32.totalorder %s191, %s193
      %p200 = scmp.eq.s32.totalorder %s31, 2
      %p201 = por %p199, %p200
      %p202 = scmp.ne.s32.totalorder %s193, %s194
      %p203 = scmp.eq.s32.totalorder %s31, 0
      %p204 = por %p202, %p203
      %p205 = scmp.ne.s32.totalorder %s193, %s194
      %p206 = scmp.eq.s32.totalorder %s32, 2
      %p207 = por %p205, %p206
      %p209 = scmp.ne.s32.totalorder %s194, %s208
      %p210 = scmp.eq.s32.totalorder %s32, 0
      %p211 = por %p209, %p210
      %s213 = sadd.s32 %s212, 1
      %p216 = scmp.eq.s32.totalorder %s26, 2
      %p217 = scmp.ne.s32.totalorder %s212, %s214
      %p218 = scmp.eq.s32.totalorder %s26, 0
      %p219 = por %p217, %p218
      %p220 = scmp.ne.s32.totalorder %s212, %s214
      %p221 = scmp.eq.s32.totalorder %s31, 2
      %p222 = por %p220, %p221
      %p223 = scmp.ne.s32.totalorder %s214, %s215
      %p224 = scmp.eq.s32.totalorder %s31, 0
      %p225 = por %p223, %p224
      %p226 = scmp.ne.s32.totalorder %s214, %s215
      %p227 = scmp.eq.s32.totalorder %s32, 2
      %p228 = por %p226, %p227
      %p230 = scmp.ne.s32.totalorder %s215, %s229
      %p231 = scmp.eq.s32.totalorder %s32, 0
      %p232 = por %p230, %p231
      %s234 = sadd.s32 %s233, 1
      %p237 = scmp.eq.s32.totalorder %s26, 2
      %p238 = scmp.ne.s32.totalorder %s233, %s235
      %p239 = scmp.eq.s32.totalorder %s26, 0
      %p240 = por %p238, %p239
      %p241 = scmp.ne.s32.totalorder %s233, %s235
      %p242 = scmp.eq.s32.totalorder %s31, 2
      %p243 = por %p241, %p242
      %p244 = scmp.ne.s32.totalorder %s235, %s236
      %p245 = scmp.eq.s32.totalorder %s31, 0
      %p246 = por %p244, %p245
      %p247 = scmp.ne.s32.totalorder %s235, %s236
      %p248 = scmp.eq.s32.totalorder %s32, 2
      %p249 = por %p247, %p248
      %p251 = scmp.ne.s32.totalorder %s236, %s250
      %p252 = scmp.eq.s32.totalorder %s32, 0
      %p253 = por %p251, %p252
      %s255 = sadd.s32 %s254, 1
      %p258 = scmp.eq.s32.totalorder %s26, 2
      %p259 = scmp.ne.s32.totalorder %s254, %s256
      %p260 = scmp.eq.s32.totalorder %s26, 0
      %p261 = por %p259, %p260
      %p262 = scmp.ne.s32.totalorder %s254, %s256
      %p263 = scmp.eq.s32.totalorder %s31, 2
      %p264 = por %p262, %p263
      %p265 = scmp.ne.s32.totalorder %s256, %s257
      %p266 = scmp.eq.s32.totalorder %s31, 0
      %p267 = por %p265, %p266
      %p268 = scmp.ne.s32.totalorder %s256, %s257
      %p269 = scmp.eq.s32.totalorder %s32, 2
      %p270 = por %p268, %p269
      %p272 = scmp.ne.s32.totalorder %s257, %s271
      %p273 = scmp.eq.s32.totalorder %s32, 0
      %p274 = por %p272, %p273
      %s276 = sadd.s32 %s275, 1
      %p279 = scmp.eq.s32.totalorder %s26, 2
      %p280 = scmp.ne.s32.totalorder %s275, %s277
      %p281 = scmp.eq.s32.totalorder %s26, 0
      %p282 = por %p280, %p281
      %p283 = scmp.ne.s32.totalorder %s275, %s277
      %p284 = scmp.eq.s32.totalorder %s31, 2
      %p285 = por %p283, %p284
      %p286 = scmp.ne.s32.totalorder %s277, %s278
      %p287 = scmp.eq.s32.totalorder %s31, 0
      %p288 = por %p286, %p287
      %p289 = scmp.ne.s32.totalorder %s277, %s278
      %p290 = scmp.eq.s32.totalorder %s32, 2
      %p291 = por %p289, %p290
      %p293 = scmp.ne.s32.totalorder %s278, %s292
      %p294 = scmp.eq.s32.totalorder %s32, 0
      %p295 = por %p293, %p294
      %s296 = ssub.s32 %s26, %s33
      %p297 = scmp.eq.s32.totalorder %s296, 0
      %s299 = sadd.s32 %s298, 1
      %s300 = scalar_select %p297, %s298, %s299
      %p303 = pneg %p297
      %p304 = scmp.eq.s32.totalorder %s26, 2
      %p305 = por %p303, %p304
      %p306 = scmp.ne.s32.totalorder %s298, %s301
      %p307 = scmp.eq.s32.totalorder %s26, 0
      %p308 = por %p306, %p307
      %p309 = scmp.ne.s32.totalorder %s298, %s301
      %p310 = scmp.eq.s32.totalorder %s31, 2
      %p311 = por %p309, %p310
      %p312 = scmp.ne.s32.totalorder %s301, %s302
      %p313 = scmp.eq.s32.totalorder %s31, 0
      %p314 = por %p312, %p313
      %p315 = scmp.ne.s32.totalorder %s301, %s302
      %p316 = scmp.eq.s32.totalorder %s32, 2
      %p317 = por %p315, %p316
      %p319 = scmp.ne.s32.totalorder %s302, %s318
      %p320 = scmp.eq.s32.totalorder %s32, 0
      %p321 = por %p319, %p320
      %p322 = scmp.le.s32.totalorder 1, %s26
      %p323 = scmp.lt.s32.totalorder %s26, 4
      %p324 = pnand %p322, %p323
      %p325 = pneg %p324
      // Predicated region
      $region9: #{tpu_custom_call.1} parent=5 // pred_check
        _
      $region10: #{tpu_custom_call.1} parent=5 // pred_check_branch
        %327 = sbr.rel (%p324) target = $region12
      $region11: #{tpu_custom_call.1} parent=5 // pred_region
        %s328 = ssub.s32 %s26, 1
        // Predicated region
        $region13: #{tpu_custom_call.1} parent=11 // pred_check
          %p329 = pneg %p99
        $region14: #{tpu_custom_call.1} parent=11 // pred_check_branch
          %331 = sbr.rel (%p329) target = $region16
        $region15: #{tpu_custom_call.1} parent=11 // pred_region
          %s333 = ssub.s32 256, 256
          %334 = vsyncadd [#allocation6], %s333
          %s335 = sshll.u32 [#allocation5], 4
          %s336 = int_to_ptr.vmem [resolvable:$true] %s335
          %341 = dma.hbm_to_vmem [thread:$0]  %s2, 256, %s336, [#allocation6], 64, 64, 4
        $region16: #{tpu_custom_call.1} parent=11 // pred_fallthru
          _
        // Predicated region
        $region17: #{tpu_custom_call.1} parent=11 // pred_check
          %p342 = pneg %p120
        $region18: #{tpu_custom_call.1} parent=11 // pred_check_branch
          %344 = sbr.rel (%p342) target = $region20
        $region19: #{tpu_custom_call.1} parent=11 // pred_region
          %s346 = ssub.s32 256, 256
          %347 = vsyncadd [#allocation6], %s346
          %s348 = sshll.u32 [#allocation7], 4
          %s349 = int_to_ptr.vmem [resolvable:$true] %s348
          %354 = dma.hbm_to_vmem [thread:$0]  %s3, 256, %s349, [#allocation6], 64, 64, 4
        $region20: #{tpu_custom_call.1} parent=11 // pred_fallthru
          _
        // Predicated region
        $region21: #{tpu_custom_call.1} parent=11 // pred_check
          %p355 = pneg %p141
        $region22: #{tpu_custom_call.1} parent=11 // pred_check_branch
          %357 = sbr.rel (%p355) target = $region24
        $region23: #{tpu_custom_call.1} parent=11 // pred_region
          %s359 = ssub.s32 256, 256
          %360 = vsyncadd [#allocation9], %s359
          %s361 = sshll.u32 [#allocation8], 4
          %s362 = int_to_ptr.vmem [resolvable:$true] %s361
          %367 = dma.hbm_to_vmem [thread:$0]  %s4, 256, %s362, [#allocation9], 64, 64, 4
        $region24: #{tpu_custom_call.1} parent=11 // pred_fallthru
          _
        // Predicated region
        $region25: #{tpu_custom_call.1} parent=11 // pred_check
          %p368 = pneg %p162
        $region26: #{tpu_custom_call.1} parent=11 // pred_check_branch
          %370 = sbr.rel (%p368) target = $region28
        $region27: #{tpu_custom_call.1} parent=11 // pred_region
          _
        $region28: #{tpu_custom_call.1} parent=11 // pred_fallthru
          _
        // Predicated region
        $region29: #{tpu_custom_call.1} parent=11 // pred_check
          %p371 = pneg %p183
        $region30: #{tpu_custom_call.1} parent=11 // pred_check_branch
          %373 = sbr.rel (%p371) target = $region32
        $region31: #{tpu_custom_call.1} parent=11 // pred_region
          _
        $region32: #{tpu_custom_call.1} parent=11 // pred_fallthru
          _
        // Predicated region
        $region33: #{tpu_custom_call.1} parent=11 // pred_check
          %p374 = pneg %p204
        $region34: #{tpu_custom_call.1} parent=11 // pred_check_branch
          %376 = sbr.rel (%p374) target = $region36
        $region35: #{tpu_custom_call.1} parent=11 // pred_region
          _
        $region36: #{tpu_custom_call.1} parent=11 // pred_fallthru
          _
        // Predicated region
        $region37: #{tpu_custom_call.1} parent=11 // pred_check
          %p377 = pneg %p225
        $region38: #{tpu_custom_call.1} parent=11 // pred_check_branch
          %379 = sbr.rel (%p377) target = $region40
        $region39: #{tpu_custom_call.1} parent=11 // pred_region
          _
        $region40: #{tpu_custom_call.1} parent=11 // pred_fallthru
          _
        // Predicated region
        $region41: #{tpu_custom_call.1} parent=11 // pred_check
          %p380 = pneg %p246
        $region42: #{tpu_custom_call.1} parent=11 // pred_check_branch
          %382 = sbr.rel (%p380) target = $region44
        $region43: #{tpu_custom_call.1} parent=11 // pred_region
          _
        $region44: #{tpu_custom_call.1} parent=11 // pred_fallthru
          _
        // Predicated region
        $region45: #{tpu_custom_call.1} parent=11 // pred_check
          %p383 = pneg %p267
        $region46: #{tpu_custom_call.1} parent=11 // pred_check_branch
          %385 = sbr.rel (%p383) target = $region48
        $region47: #{tpu_custom_call.1} parent=11 // pred_region
          _
        $region48: #{tpu_custom_call.1} parent=11 // pred_fallthru
          _
        // Predicated region
        $region49: #{tpu_custom_call.1} parent=11 // pred_check
          %p386 = pneg %p288
        $region50: #{tpu_custom_call.1} parent=11 // pred_check_branch
          %388 = sbr.rel (%p386) target = $region52
        $region51: #{tpu_custom_call.1} parent=11 // pred_region
          _
        $region52: #{tpu_custom_call.1} parent=11 // pred_fallthru
          _
      $region12: #{tpu_custom_call.1} parent=5 // pred_fallthru
        _
      %p389 = scmp.lt.s32.totalorder %s26, 3
      // Predicated region
      $region53: #{tpu_custom_call.1} parent=5 // pred_check
        %p390 = pneg %p389
      $region54: #{tpu_custom_call.1} parent=5 // pred_check_branch
        %392 = sbr.rel (%p390) target = $region56
      $region55: #{tpu_custom_call.1} parent=5 // pred_region
        // Predicated region
        $region57: #{tpu_custom_call.1} parent=55 // pred_check
          %p393 = pneg %p46
        $region58: #{tpu_custom_call.1} parent=55 // pred_check_branch
          %395 = sbr.rel (%p393) target = $region60
        $region59: #{tpu_custom_call.1} parent=55 // pred_region
          %p396 = scmp.lt.s32.totalorder %s26, 2
          %s397 = scalar_select %p396, %s26, 2
          %s398 = smul.addr %s397, 2
          %s399 = smul.addr %s398, 8
          %s400 = scalar_lea.vmem %s0, %s399
        $region60: #{tpu_custom_call.1} parent=55 // pred_fallthru
          _
        // Predicated region
        $region61: #{tpu_custom_call.1} parent=55 // pred_check
          %p401 = pneg %p72
        $region62: #{tpu_custom_call.1} parent=55 // pred_check_branch
          %403 = sbr.rel (%p401) target = $region64
        $region63: #{tpu_custom_call.1} parent=55 // pred_region
          %s404 = sand.u32 %s62, 1
          %s405 = scalar_lea.sflag [#allocation3], %s404
          %s406 = sand.u32 %s62, 1
          %s407 = smul.addr %s406, 2
          %s408 = scalar_lea.vmem [#allocation2], %s407
          %s410 = ssub.s32 32, 32
          %411 = vsyncadd %s405, %s410
          %s412 = smul.addr %s26, 32
          %s413 = scalar_lea.hbm %s1, %s412
          %s415 = sshll.u32 %s408, 4
          %s416 = int_to_ptr.vmem [resolvable:$true] %s415
          %418 = dma.hbm_to_vmem [thread:$0]  %s413, 32, %s416, %s405
        $region64: #{tpu_custom_call.1} parent=55 // pred_fallthru
          _
      $region56: #{tpu_custom_call.1} parent=5 // pred_fallthru
        _
      %p419 = scmp.le.s32.totalorder 1, %s26
      %p420 = scmp.lt.s32.totalorder %s26, 4
      %p421 = pnand %p419, %p420
      %p422 = pneg %p421
      // Predicated region
      $region65: #{tpu_custom_call.1} parent=5 // pred_check
        _
      $region66: #{tpu_custom_call.1} parent=5 // pred_check_branch
        %424 = sbr.rel (%p421) target = $region68
      $region67: #{tpu_custom_call.1} parent=5 // pred_region
        %s425 = ssub.s32 %s26, 1
        %s426 = sand.u32 %s65, 1
        %s427 = scalar_lea.sflag [#allocation3], %s426
        %s428 = sand.u32 %s65, 1
        %s429 = smul.addr %s428, 2
        %s430 = scalar_lea.vmem [#allocation2], %s429
        // Predicated region
        $region69: #{tpu_custom_call.1} parent=67 // pred_check
          %p431 = pneg %p78
        $region70: #{tpu_custom_call.1} parent=67 // pred_check_branch
          %433 = sbr.rel (%p431) target = $region72
        $region71: #{tpu_custom_call.1} parent=67 // pred_region
          %434 = dma.done %s427, 32
        $region72: #{tpu_custom_call.1} parent=67 // pred_fallthru
          _
        // Predicated region
        $region73: #{tpu_custom_call.1} parent=67 // pred_check
          %p435 = pneg %p99
        $region74: #{tpu_custom_call.1} parent=67 // pred_check_branch
          %437 = sbr.rel (%p435) target = $region76
        $region75: #{tpu_custom_call.1} parent=67 // pred_region
          %438 = dma.done [#allocation6], 256
        $region76: #{tpu_custom_call.1} parent=67 // pred_fallthru
          _
        // Predicated region
        $region77: #{tpu_custom_call.1} parent=67 // pred_check
          %p439 = pneg %p120
        $region78: #{tpu_custom_call.1} parent=67 // pred_check_branch
          %441 = sbr.rel (%p439) target = $region80
        $region79: #{tpu_custom_call.1} parent=67 // pred_region
          %442 = dma.done [#allocation6], 256
        $region80: #{tpu_custom_call.1} parent=67 // pred_fallthru
          _
        // Predicated region
        $region81: #{tpu_custom_call.1} parent=67 // pred_check
          %p443 = pneg %p141
        $region82: #{tpu_custom_call.1} parent=67 // pred_check_branch
          %445 = sbr.rel (%p443) target = $region84
        $region83: #{tpu_custom_call.1} parent=67 // pred_region
          %446 = dma.done [#allocation9], 256
        $region84: #{tpu_custom_call.1} parent=67 // pred_fallthru
          _
        %p447 = scmp.lt.s32.totalorder %s31, 2
        %s448 = scalar_select %p447, %s31, 2
        %s449 = smul.addr %s448, 2
        %s450 = smul.addr %s449, 8
        %s451 = scalar_lea.vmem %s0, %s450
        %p452 = pneg %p52
        %p453 = pneg %p49
        %s454 = sand.u32 %s65, 1
        %s455 = scalar_lea.sflag [#allocation3], %s454
        %s456 = sand.u32 %s65, 1
        %s457 = smul.addr %s456, 2
        %s458 = scalar_lea.vmem [#allocation2], %s457
        %p459 = pneg %p78
        %p460 = pneg %p75
        %p461 = pneg %p99
        %p462 = pneg %p96
        %p463 = pneg %p120
        %p464 = pneg %p117
        %p465 = pneg %p141
        %p466 = pneg %p138
        %p467 = pneg %p162
        %p468 = pneg %p159
        %p469 = pneg %p183
        %p470 = pneg %p180
        %p471 = pneg %p204
        %p472 = pneg %p201
        %p473 = pneg %p225
        %p474 = pneg %p222
        %p475 = pneg %p246
        %p476 = pneg %p243
        %p477 = pneg %p267
        %p478 = pneg %p264
        %p479 = pneg %p288
        %p480 = pneg %p285
        %p481 = pneg %p314
        %p482 = pneg %p311
        %s483 = sand.u32 %s301, 1
        %s484 = scalar_lea.sflag [#allocation4], %s483
        %s485 = sand.u32 %s301, 1
        %s486 = smul.addr %s485, 16
        %s487 = scalar_lea.vmem [#allocation10], %s486
        %p488 = scmp.lt.s32.totalorder %s31, 2
        %s489 = scalar_select %p488, %s31, 2
        %s490 = smul.addr %s489, 2
        %s491 = smul.addr %s490, 8
        %s492 = scalar_lea.vmem %s0, %s491
        %v494 = vld [vmem:[%s492] sm:$0xff]
        %v495 = vld [vmem:[%s492 + $0x8] sm:$0xff]
        %v496 = vld [vmem:[%s430] sm:$0x3]
        %v497 = vpack.c.bf16 %v495, %v494
        %v498 = vld [vmem:[#allocation5] sm:$0xf]
        %v499 = vld [vmem:[#allocation5 + $0x4] sm:$0xf]
        %v500 = vld [vmem:[#allocation5 + $0x8] sm:$0xf]
        %v501 = vld [vmem:[#allocation5 + $0xc] sm:$0xf]
        %v506 = vunpack.c.l.b16 %v498
        %v507 = vunpack.c.l.b16 %v499
        %v508 = vunpack.c.l.b16 %v500
        %v509 = vunpack.c.l.b16 %v501
        %v510 = vpack.c.b16 %v507, %v506
        %v511 = vpack.c.b16 %v509, %v508
        %vm514 = vcmask 261120
        %v516 = vsel %vm514, %v497, 0
        %518 = vmatprep.subr.bf16.mxu0 0
        %519 = vmatpush1.bf16.msra.mxu0 %v510
        %520 = vmatprep.subr.bf16.mxu0 0
        %521 = vmatpush1.bf16.msra.mxu0 %v511
        %522 = vmatprep.subr.bf16.mxu0 0
        %523 = vmatpush1.bf16.msra.mxu0 0
        %524 = vmatprep.subr.bf16.mxu0 0
        %525 = vmatpush1.bf16.msra.mxu0 0
        %526 = vmatprep.subr.bf16.mxu0 0
        %527 = vmatpush1.bf16.msra.mxu0 0
        %528 = vmatprep.subr.bf16.mxu0 0
        %529 = vmatpush1.bf16.msra.mxu0 0
        %530 = vmatprep.subr.bf16.mxu0 0
        %531 = vmatpush1.bf16.msra.mxu0 0
        %532 = vmatprep.subr.bf16.mxu0 0
        %533 = vmatpush1.bf16.msra.mxu0 0
        %534 = vmatprep.subr.bf16.mxu0 0
        %535 = vmatpush1.bf16.msra.mxu0 0
        %536 = vmatprep.subr.bf16.mxu0 0
        %537 = vmatpush1.bf16.msra.mxu0 0
        %538 = vmatprep.subr.bf16.mxu0 0
        %539 = vmatpush1.bf16.msra.mxu0 0
        %540 = vmatprep.subr.bf16.mxu0 0
        %541 = vmatpush1.bf16.msra.mxu0 0
        %542 = vmatprep.subr.bf16.mxu0 0
        %543 = vmatpush1.bf16.msra.mxu0 0
        %544 = vmatprep.subr.bf16.mxu0 0
        %545 = vmatpush1.bf16.msra.mxu0 0
        %546 = vmatprep.subr.bf16.mxu0 0
        %547 = vmatpush1.bf16.msra.mxu0 0
        %548 = vmatprep.subr.bf16.mxu0 0
        %549 = vmatpush1.bf16.msra.mxu0 0
        %550 = vmatprep.mubr.bf16.mxu0 0
        %551 = vmatmul.mubr.bf16.gmra.mrb[0].mxu0 %v516
        %v552 = vpop.f32.mrb[0].mxu0
        %v553 = vadd.f32 0.0, %v552
        %v554 = vpop.f32.mrb[0].mxu0
        %v555 = vpop.f32.mrb[0].mxu0
        %v556 = vadd.f32 0.0, %v555
        %v557 = vpop.f32.mrb[0].mxu0
        %558 = vdwg.mxu0
        %v559 = vmul.f32 %v553, 0.17677669
        %v560 = vmul.f32 %v556, 0.17677669
        %v561 = vpack.c.bf16 %v559, %v559
        %v562 = vpack.c.bf16 %v560, %v560
        %v563 = vpack.c.bf16 %v553, %v553
        %v564 = vpack.c.bf16 %v556, %v556
        %v567 = vunpack.c.l.s4 1966171168
        %v568 = vunpack.c.0.s8 %v567
        %v569 = vlaneseq
        %v570 = vshrl.u32 %v569, 7
        %v571 = vsub.s32 %v568, %v570
        %v572 = vrot.slane %v496, %v571
        %v573 = vcombine.high %v572, %v572
        %v575 = vunpack.c.l.s4 1966171168
        %v576 = vunpack.c.0.s8 %v575
        %v577 = vlaneseq
        %v578 = vshrl.u32 %v577, 7
        %v579 = vsub.s32 %v576, %v578
        %v580 = vrot.slane %v572, %v579
        %v582 = vunpack.c.l.s4 1966171168
        %v583 = vunpack.c.0.s8 %v582
        %v584 = vlaneseq
        %v585 = vshrl.u32 %v584, 7
        %v586 = vsub.s32 %v583, %v585
        %v587 = vrot.slane %v573, %v586
        %v588 = vlaneseq
        %v589 = vshrl.u32 %v588, 7
        %v590 = vsub.s32 0, %v589
        %v591 = vrot.slane %v580, %v590
        %v592 = vlaneseq
        %v593 = vshrl.u32 %v592, 7
        %v594 = vsub.s32 0, %v593
        %v595 = vrot.slane %v587, %v594
        %599 = vrot.lane.b32.xlu0 %v563, 96
        %v600 = vpop.permute.xlu0 %599
        %v602 = vsel %vm514, %v561, 0
        %v605 = vsel %vm514, %v600, 0
        %607 = vmatprep.subr.bf16.mxu0 0
        %608 = vmatpush1.bf16.xpose.msra.mxu0 %v605
        %609 = vmatprep.subr.bf16.mxu0 0
        %610 = vmatpush1.bf16.xpose.msra.mxu0 0
        %611 = vmatprep.subr.bf16.mxu0 0
        %612 = vmatpush1.bf16.xpose.msra.mxu0 0
        %613 = vmatprep.subr.bf16.mxu0 0
        %614 = vmatpush1.bf16.xpose.msra.mxu0 0
        %615 = vmatprep.subr.bf16.mxu0 0
        %616 = vmatpush1.bf16.xpose.msra.mxu0 0
        %617 = vmatprep.subr.bf16.mxu0 0
        %618 = vmatpush1.bf16.xpose.msra.mxu0 0
        %619 = vmatprep.subr.bf16.mxu0 0
        %620 = vmatpush1.bf16.xpose.msra.mxu0 0
        %621 = vmatprep.subr.bf16.mxu0 0
        %622 = vmatpush1.bf16.xpose.msra.mxu0 0
        %623 = vmatprep.subr.bf16.mxu0 0
        %624 = vmatpush1.bf16.xpose.msra.mxu0 0
        %625 = vmatprep.subr.bf16.mxu0 0
        %626 = vmatpush1.bf16.xpose.msra.mxu0 0
        %627 = vmatprep.subr.bf16.mxu0 0
        %628 = vmatpush1.bf16.xpose.msra.mxu0 0
        %629 = vmatprep.subr.bf16.mxu0 0
        %630 = vmatpush1.bf16.xpose.msra.mxu0 0
        %631 = vmatprep.subr.bf16.mxu0 0
        %632 = vmatpush1.bf16.xpose.msra.mxu0 0
        %633 = vmatprep.subr.bf16.mxu0 0
        %634 = vmatpush1.bf16.xpose.msra.mxu0 0
        %635 = vmatprep.subr.bf16.mxu0 0
        %636 = vmatpush1.bf16.xpose.msra.mxu0 0
        %637 = vmatprep.subr.bf16.mxu0 0
        %638 = vmatpush1.bf16.xpose.msra.mxu0 0
        %639 = vmatprep.mubr.bf16.mxu0 0
        %640 = vmatmul.mubr.bf16.gmra.mrb[0].mxu0 %v602
        %v641 = vpop.f32.mrb[0].mxu0
        %v642 = vadd.f32 %v591, %v641
        %v643 = vpop.f32.mrb[0].mxu0
        %v644 = vpop.f32.mrb[0].mxu0
        %v645 = vpop.f32.mrb[0].mxu0
        %646 = vdwg.mxu0
        %648 = vrot.lane.b32.xlu0 %v564, 96
        %v649 = vpop.permute.xlu0 %648
        %v651 = vsel %vm514, %v562, 0
        %v654 = vsel %vm514, %v649, 0
        %656 = vmatprep.subr.bf16.mxu0 0
        %657 = vmatpush1.bf16.xpose.msra.mxu0 %v654
        %658 = vmatprep.subr.bf16.mxu0 0
        %659 = vmatpush1.bf16.xpose.msra.mxu0 0
        %660 = vmatprep.subr.bf16.mxu0 0
        %661 = vmatpush1.bf16.xpose.msra.mxu0 0
        %662 = vmatprep.subr.bf16.mxu0 0
        %663 = vmatpush1.bf16.xpose.msra.mxu0 0
        %664 = vmatprep.subr.bf16.mxu0 0
        %665 = vmatpush1.bf16.xpose.msra.mxu0 0
        %666 = vmatprep.subr.bf16.mxu0 0
        %667 = vmatpush1.bf16.xpose.msra.mxu0 0
        %668 = vmatprep.subr.bf16.mxu0 0
        %669 = vmatpush1.bf16.xpose.msra.mxu0 0
        %670 = vmatprep.subr.bf16.mxu0 0
        %671 = vmatpush1.bf16.xpose.msra.mxu0 0
        %672 = vmatprep.subr.bf16.mxu0 0
        %673 = vmatpush1.bf16.xpose.msra.mxu0 0
        %674 = vmatprep.subr.bf16.mxu0 0
        %675 = vmatpush1.bf16.xpose.msra.mxu0 0
        %676 = vmatprep.subr.bf16.mxu0 0
        %677 = vmatpush1.bf16.xpose.msra.mxu0 0
        %678 = vmatprep.subr.bf16.mxu0 0
        %679 = vmatpush1.bf16.xpose.msra.mxu0 0
        %680 = vmatprep.subr.bf16.mxu0 0
        %681 = vmatpush1.bf16.xpose.msra.mxu0 0
        %682 = vmatprep.subr.bf16.mxu0 0
        %683 = vmatpush1.bf16.xpose.msra.mxu0 0
        %684 = vmatprep.subr.bf16.mxu0 0
        %685 = vmatpush1.bf16.xpose.msra.mxu0 0
        %686 = vmatprep.subr.bf16.mxu0 0
        %687 = vmatpush1.bf16.xpose.msra.mxu0 0
        %688 = vmatprep.mubr.bf16.mxu0 0
        %689 = vmatmul.mubr.bf16.gmra.mrb[0].mxu0 %v651
        %v690 = vpop.f32.mrb[0].mxu0
        %v691 = vadd.f32 %v595, %v690
        %v692 = vpop.f32.mrb[0].mxu0
        %v693 = vpop.f32.mrb[0].mxu0
        %v694 = vpop.f32.mrb[0].mxu0
        %695 = vdwg.mxu0
        %vm696 = vcmask 64512
        %v697 = vsel %vm696, %v642, -inf
        %698 = vmax.xlane.f32.xlu0 %v697
        %v699 = vpop.xlane.xlu0 %698
        %v700 = vsel %vm696, %v691, -inf
        %701 = vmax.xlane.f32.xlu0 %v700
        %v702 = vpop.xlane.xlu0 %701
        %v703 = vsub.f32 %v642, %v699
        %v704 = vsub.f32 %v691, %v702
        %v705 = vmul.f32 %v703, 1.442695
        %v706 = vpow.pop %v705
        %v707 = vmul.f32 %v704, 1.442695
        %v708 = vpow.pop %v707
        %v709 = vsel %vm696, %v706, 0.0
        %710 = vadd.xlane.f32.xlu0 %v709
        %v711 = vpop.xlane.xlu0 %710
        %v712 = vsel %vm696, %v708, 0.0
        %713 = vadd.xlane.f32.xlu0 %v712
        %v714 = vpop.xlane.xlu0 %713
        %v715 = vrcp.pop %v711
        %v716 = vrcp.pop %v714
        %v717 = vmul.f32 %v706, %v715
        %v718 = vmul.f32 %v708, %v716
        %v719 = vpack.c.bf16 %v717, %v717
        %v720 = vpack.c.bf16 %v718, %v718
        %721 = vrot.lane.b32.xlu0 %v563, 64
        %v722 = vpop.permute.xlu0 %721
        %v724 = vsel %vm696, %v719, 0
        %vm726 = vcmask 1043456
        %v728 = vsel %vm726, %v722, 0
        %730 = vmatprep.subr.bf16.mxu0 0
        %731 = vmatpush1.bf16.msra.mxu0 %v728
        %732 = vmatprep.subr.bf16.mxu0 0
        %733 = vmatpush1.bf16.msra.mxu0 0
        %734 = vmatprep.subr.bf16.mxu0 0
        %735 = vmatpush1.bf16.msra.mxu0 0
        %736 = vmatprep.subr.bf16.mxu0 0
        %737 = vmatpush1.bf16.msra.mxu0 0
        %738 = vmatprep.subr.bf16.mxu0 0
        %739 = vmatpush1.bf16.msra.mxu0 0
        %740 = vmatprep.subr.bf16.mxu0 0
        %741 = vmatpush1.bf16.msra.mxu0 0
        %742 = vmatprep.subr.bf16.mxu0 0
        %743 = vmatpush1.bf16.msra.mxu0 0
        %744 = vmatprep.subr.bf16.mxu0 0
        %745 = vmatpush1.bf16.msra.mxu0 0
        %746 = vmatprep.subr.bf16.mxu0 0
        %747 = vmatpush1.bf16.msra.mxu0 0
        %748 = vmatprep.subr.bf16.mxu0 0
        %749 = vmatpush1.bf16.msra.mxu0 0
        %750 = vmatprep.subr.bf16.mxu0 0
        %751 = vmatpush1.bf16.msra.mxu0 0
        %752 = vmatprep.subr.bf16.mxu0 0
        %753 = vmatpush1.bf16.msra.mxu0 0
        %754 = vmatprep.subr.bf16.mxu0 0
        %755 = vmatpush1.bf16.msra.mxu0 0
        %756 = vmatprep.subr.bf16.mxu0 0
        %757 = vmatpush1.bf16.msra.mxu0 0
        %758 = vmatprep.subr.bf16.mxu0 0
        %759 = vmatpush1.bf16.msra.mxu0 0
        %760 = vmatprep.subr.bf16.mxu0 0
        %761 = vmatpush1.bf16.msra.mxu0 0
        %762 = vmatprep.mubr.bf16.mxu0 0
        %763 = vmatmul.mubr.bf16.gmra.mrb[0].mxu0 %v724
        %v764 = vpop.f32.mrb[0].mxu0
        %v765 = vadd.f32 0.0, %v764
        %v766 = vpop.f32.mrb[0].mxu0
        %v767 = vpop.f32.mrb[0].mxu0
        %v768 = vpop.f32.mrb[0].mxu0
        %769 = vdwg.mxu0
        %770 = vrot.lane.b32.xlu0 %v564, 64
        %v771 = vpop.permute.xlu0 %770
        %v773 = vsel %vm696, %v720, 0
        %v776 = vsel %vm726, %v771, 0
        %778 = vmatprep.subr.bf16.mxu0 0
        %779 = vmatpush1.bf16.msra.mxu0 %v776
        %780 = vmatprep.subr.bf16.mxu0 0
        %781 = vmatpush1.bf16.msra.mxu0 0
        %782 = vmatprep.subr.bf16.mxu0 0
        %783 = vmatpush1.bf16.msra.mxu0 0
        %784 = vmatprep.subr.bf16.mxu0 0
        %785 = vmatpush1.bf16.msra.mxu0 0
        %786 = vmatprep.subr.bf16.mxu0 0
        %787 = vmatpush1.bf16.msra.mxu0 0
        %788 = vmatprep.subr.bf16.mxu0 0
        %789 = vmatpush1.bf16.msra.mxu0 0
        %790 = vmatprep.subr.bf16.mxu0 0
        %791 = vmatpush1.bf16.msra.mxu0 0
        %792 = vmatprep.subr.bf16.mxu0 0
        %793 = vmatpush1.bf16.msra.mxu0 0
        %794 = vmatprep.subr.bf16.mxu0 0
        %795 = vmatpush1.bf16.msra.mxu0 0
        %796 = vmatprep.subr.bf16.mxu0 0
        %797 = vmatpush1.bf16.msra.mxu0 0
        %798 = vmatprep.subr.bf16.mxu0 0
        %799 = vmatpush1.bf16.msra.mxu0 0
        %800 = vmatprep.subr.bf16.mxu0 0
        %801 = vmatpush1.bf16.msra.mxu0 0
        %802 = vmatprep.subr.bf16.mxu0 0
        %803 = vmatpush1.bf16.msra.mxu0 0
        %804 = vmatprep.subr.bf16.mxu0 0
        %805 = vmatpush1.bf16.msra.mxu0 0
        %806 = vmatprep.subr.bf16.mxu0 0
        %807 = vmatpush1.bf16.msra.mxu0 0
        %808 = vmatprep.subr.bf16.mxu0 0
        %809 = vmatpush1.bf16.msra.mxu0 0
        %810 = vmatprep.mubr.bf16.mxu0 0
        %811 = vmatmul.mubr.bf16.gmra.mrb[0].mxu0 %v773
        %v812 = vpop.f32.mrb[0].mxu0
        %v813 = vadd.f32 0.0, %v812
        %v814 = vpop.f32.mrb[0].mxu0
        %v815 = vpop.f32.mrb[0].mxu0
        %v816 = vpop.f32.mrb[0].mxu0
        %817 = vdwg.mxu0
        %v818 = vpack.c.bf16 %v813, %v765
        %v819 = vld [vmem:[#allocation7] sm:$0xf]
        %v820 = vld [vmem:[#allocation7 + $0x4] sm:$0xf]
        %v821 = vld [vmem:[#allocation7 + $0x8] sm:$0xf]
        %v822 = vld [vmem:[#allocation7 + $0xc] sm:$0xf]
        %v827 = vunpack.c.l.b16 %v819
        %v828 = vunpack.c.l.b16 %v820
        %v829 = vunpack.c.l.b16 %v821
        %v830 = vunpack.c.l.b16 %v822
        %v831 = vpack.c.b16 %v828, %v827
        %v832 = vpack.c.b16 %v830, %v829
        %v836 = vsel %vm514, %v818, 0
        %838 = vmatprep.subr.bf16.mxu0 0
        %839 = vmatpush1.bf16.msra.mxu0 %v831
        %840 = vmatprep.subr.bf16.mxu0 0
        %841 = vmatpush1.bf16.msra.mxu0 %v832
        %842 = vmatprep.subr.bf16.mxu0 0
        %843 = vmatpush1.bf16.msra.mxu0 0
        %844 = vmatprep.subr.bf16.mxu0 0
        %845 = vmatpush1.bf16.msra.mxu0 0
        %846 = vmatprep.subr.bf16.mxu0 0
        %847 = vmatpush1.bf16.msra.mxu0 0
        %848 = vmatprep.subr.bf16.mxu0 0
        %849 = vmatpush1.bf16.msra.mxu0 0
        %850 = vmatprep.subr.bf16.mxu0 0
        %851 = vmatpush1.bf16.msra.mxu0 0
        %852 = vmatprep.subr.bf16.mxu0 0
        %853 = vmatpush1.bf16.msra.mxu0 0
        %854 = vmatprep.subr.bf16.mxu0 0
        %855 = vmatpush1.bf16.msra.mxu0 0
        %856 = vmatprep.subr.bf16.mxu0 0
        %857 = vmatpush1.bf16.msra.mxu0 0
        %858 = vmatprep.subr.bf16.mxu0 0
        %859 = vmatpush1.bf16.msra.mxu0 0
        %860 = vmatprep.subr.bf16.mxu0 0
        %861 = vmatpush1.bf16.msra.mxu0 0
        %862 = vmatprep.subr.bf16.mxu0 0
        %863 = vmatpush1.bf16.msra.mxu0 0
        %864 = vmatprep.subr.bf16.mxu0 0
        %865 = vmatpush1.bf16.msra.mxu0 0
        %866 = vmatprep.subr.bf16.mxu0 0
        %867 = vmatpush1.bf16.msra.mxu0 0
        %868 = vmatprep.subr.bf16.mxu0 0
        %869 = vmatpush1.bf16.msra.mxu0 0
        %870 = vmatprep.mubr.bf16.mxu0 0
        %871 = vmatmul.mubr.bf16.gmra.mrb[0].mxu0 %v836
        %v872 = vpop.f32.mrb[0].mxu0
        %v873 = vadd.f32 0.0, %v872
        %v874 = vpop.f32.mrb[0].mxu0
        %v875 = vpop.f32.mrb[0].mxu0
        %v876 = vadd.f32 0.0, %v875
        %v877 = vpop.f32.mrb[0].mxu0
        %878 = vdwg.mxu0
        %v879 = vadd.f32 %v494, %v873
        %v880 = vadd.f32 %v495, %v876
        %v881 = vld [vmem:[%s8] sm:$0x1]
        %v882 = vld [vmem:[%s9] sm:$0x1]
        %v883 = vsel %vm514, %v879, 0.0
        %884 = vadd.xlane.f32.xlu0 %v883
        %v885 = vpop.xlane.xlu0 %884
        %v886 = vsel %vm514, %v880, 0.0
        %887 = vadd.xlane.f32.xlu0 %v886
        %v888 = vpop.xlane.xlu0 %887
        %v889 = vrcp.pop 32.0
        %v890 = vmul.f32 %v885, %v889
        %v891 = vmul.f32 %v888, %v889
        %v892 = vsub.f32 %v879, %v890
        %v893 = vsub.f32 %v880, %v891
        %v894 = vmul.f32 %v892, %v892
        %v895 = vmul.f32 %v893, %v893
        %v896 = vsel %vm514, %v894, 0.0
        %897 = vadd.xlane.f32.xlu0 %v896
        %v898 = vpop.xlane.xlu0 %897
        %v899 = vsel %vm514, %v895, 0.0
        %900 = vadd.xlane.f32.xlu0 %v899
        %v901 = vpop.xlane.xlu0 %900
        %v902 = vmul.f32 %v898, %v889
        %v903 = vmul.f32 %v901, %v889
        %v904 = vadd.f32 %v902, 1e-05
        %v905 = vadd.f32 %v903, 1e-05
        %v906 = vrsqrt.pop %v904
        %v907 = vrsqrt.pop %v905
        %v908 = vmul.f32 %v892, %v906
        %v909 = vmul.f32 %v893, %v907
        %v911 = vlaneseq
        %v912 = vshrl.u32 %v911, 7
        %v913 = vsub.s32 0, %v912
        %v914 = vrot.slane %v881, %v913
        %v916 = vmul.f32 %v908, %v914
        %v917 = vmul.f32 %v909, %v914
        %v919 = vlaneseq
        %v920 = vshrl.u32 %v919, 7
        %v921 = vsub.s32 0, %v920
        %v922 = vrot.slane %v882, %v921
        %v924 = vadd.f32 %v916, %v922
        %v925 = vadd.f32 %v917, %v922
        %v926 = vpack.c.bf16 %v925, %v924
        %v927 = vld [vmem:[#allocation8] sm:$0xf]
        %v928 = vld [vmem:[#allocation8 + $0x4] sm:$0xf]
        %v929 = vld [vmem:[#allocation8 + $0x8] sm:$0xf]
        %v930 = vld [vmem:[#allocation8 + $0xc] sm:$0xf]
        %v931 = vld [vmem:[%s5] sm:$0x1]
        %v933 = vlaneseq
        %v934 = vshrl.u32 %v933, 7
        %v935 = vsub.s32 0, %v934
        %v936 = vrot.slane %v931, %v935
        %v942 = vunpack.c.l.b16 %v927
        %v943 = vunpack.c.l.b16 %v928
        %v944 = vunpack.c.l.b16 %v929
        %v945 = vunpack.c.l.b16 %v930
        %v946 = vpack.c.b16 %v943, %v942
        %v947 = vpack.c.b16 %v945, %v944
        %v951 = vsel %vm514, %v926, 0
        %953 = vmatprep.subr.bf16.mxu0 0
        %954 = vmatpush1.bf16.msra.mxu0 %v946
        %955 = vmatprep.subr.bf16.mxu0 0
        %956 = vmatpush1.bf16.msra.mxu0 %v947
        %957 = vmatprep.subr.bf16.mxu0 0
        %958 = vmatpush1.bf16.msra.mxu0 0
        %959 = vmatprep.subr.bf16.mxu0 0
        %960 = vmatpush1.bf16.msra.mxu0 0
        %961 = vmatprep.subr.bf16.mxu0 0
        %962 = vmatpush1.bf16.msra.mxu0 0
        %963 = vmatprep.subr.bf16.mxu0 0
        %964 = vmatpush1.bf16.msra.mxu0 0
        %965 = vmatprep.subr.bf16.mxu0 0
        %966 = vmatpush1.bf16.msra.mxu0 0
        %967 = vmatprep.subr.bf16.mxu0 0
        %968 = vmatpush1.bf16.msra.mxu0 0
        %969 = vmatprep.subr.bf16.mxu0 0
        %970 = vmatpush1.bf16.msra.mxu0 0
        %971 = vmatprep.subr.bf16.mxu0 0
        %972 = vmatpush1.bf16.msra.mxu0 0
        %973 = vmatprep.subr.bf16.mxu0 0
        %974 = vmatpush1.bf16.msra.mxu0 0
        %975 = vmatprep.subr.bf16.mxu0 0
        %976 = vmatpush1.bf16.msra.mxu0 0
        %977 = vmatprep.subr.bf16.mxu0 0
        %978 = vmatpush1.bf16.msra.mxu0 0
        %979 = vmatprep.subr.bf16.mxu0 0
        %980 = vmatpush1.bf16.msra.mxu0 0
        %981 = vmatprep.subr.bf16.mxu0 0
        %982 = vmatpush1.bf16.msra.mxu0 0
        %983 = vmatprep.subr.bf16.mxu0 0
        %984 = vmatpush1.bf16.msra.mxu0 0
        %985 = vmatprep.mubr.bf16.mxu0 0
        %986 = vmatmul.mubr.bf16.gmra.mrb[0].mxu0 %v951
        %v987 = vpop.f32.mrb[0].mxu0
        %v988 = vadd.f32 %v936, %v987
        %v989 = vpop.f32.mrb[0].mxu0
        %v990 = vpop.f32.mrb[0].mxu0
        %v991 = vadd.f32 %v936, %v990
        %v992 = vpop.f32.mrb[0].mxu0
        %993 = vdwg.mxu0
        %v994 = vmax.f32 %v988, 0.0
        %v995 = vmax.f32 %v991, 0.0
        %v996 = vpack.c.bf16 %v995, %v994
        %v997 = vld [vmem:[%s6] sm:$0xf]
        %v998 = vld [vmem:[%s6 + $0x4] sm:$0xf]
        %v999 = vld [vmem:[%s6 + $0x8] sm:$0xf]
        %v1000 = vld [vmem:[%s6 + $0xc] sm:$0xf]
        %v1001 = vld [vmem:[%s6 + $0x10] sm:$0xf]
        %v1002 = vld [vmem:[%s6 + $0x14] sm:$0xf]
        %v1003 = vld [vmem:[%s6 + $0x18] sm:$0xf]
        %v1004 = vld [vmem:[%s6 + $0x1c] sm:$0xf]
        %v1005 = vld [vmem:[%s7] sm:$0x1]
        %v1007 = vlaneseq
        %v1008 = vshrl.u32 %v1007, 7
        %v1009 = vsub.s32 0, %v1008
        %v1010 = vrot.slane %v1005, %v1009
        %v1020 = vunpack.c.l.b16 %v997
        %v1021 = vunpack.c.l.b16 %v998
        %v1022 = vunpack.c.l.b16 %v999
        %v1023 = vunpack.c.l.b16 %v1000
        %v1024 = vunpack.c.l.b16 %v1001
        %v1025 = vunpack.c.l.b16 %v1002
        %v1026 = vunpack.c.l.b16 %v1003
        %v1027 = vunpack.c.l.b16 %v1004
        %v1028 = vpack.c.b16 %v1021, %v1020
        %v1029 = vpack.c.b16 %v1023, %v1022
        %v1030 = vpack.c.b16 %v1025, %v1024
        %v1031 = vpack.c.b16 %v1027, %v1026
        %vm1036 = vcmask 523264
        %v1038 = vsel %vm1036, %v996, 0
        %1040 = vmatprep.subr.bf16.mxu0 0
        %1041 = vmatpush1.bf16.msra.mxu0 %v1028
        %1042 = vmatprep.subr.bf16.mxu0 0
        %1043 = vmatpush1.bf16.msra.mxu0 %v1029
        %1044 = vmatprep.subr.bf16.mxu0 0
        %1045 = vmatpush1.bf16.msra.mxu0 %v1030
        %1046 = vmatprep.subr.bf16.mxu0 0
        %1047 = vmatpush1.bf16.msra.mxu0 %v1031
        %1048 = vmatprep.subr.bf16.mxu0 0
        %1049 = vmatpush1.bf16.msra.mxu0 0
        %1050 = vmatprep.subr.bf16.mxu0 0
        %1051 = vmatpush1.bf16.msra.mxu0 0
        %1052 = vmatprep.subr.bf16.mxu0 0
        %1053 = vmatpush1.bf16.msra.mxu0 0
        %1054 = vmatprep.subr.bf16.mxu0 0
        %1055 = vmatpush1.bf16.msra.mxu0 0
        %1056 = vmatprep.subr.bf16.mxu0 0
        %1057 = vmatpush1.bf16.msra.mxu0 0
        %1058 = vmatprep.subr.bf16.mxu0 0
        %1059 = vmatpush1.bf16.msra.mxu0 0
        %1060 = vmatprep.subr.bf16.mxu0 0
        %1061 = vmatpush1.bf16.msra.mxu0 0
        %1062 = vmatprep.subr.bf16.mxu0 0
        %1063 = vmatpush1.bf16.msra.mxu0 0
        %1064 = vmatprep.subr.bf16.mxu0 0
        %1065 = vmatpush1.bf16.msra.mxu0 0
        %1066 = vmatprep.subr.bf16.mxu0 0
        %1067 = vmatpush1.bf16.msra.mxu0 0
        %1068 = vmatprep.subr.bf16.mxu0 0
        %1069 = vmatpush1.bf16.msra.mxu0 0
        %1070 = vmatprep.subr.bf16.mxu0 0
        %1071 = vmatpush1.bf16.msra.mxu0 0
        %1072 = vmatprep.mubr.bf16.mxu0 0
        %1073 = vmatmul.mubr.bf16.gmra.mrb[0].mxu0 %v1038
        %v1074 = vpop.f32.mrb[0].mxu0
        %v1075 = vadd.f32 %v1010, %v1074
        %v1076 = vpop.f32.mrb[0].mxu0
        %v1077 = vpop.f32.mrb[0].mxu0
        %v1078 = vadd.f32 %v1010, %v1077
        %v1079 = vpop.f32.mrb[0].mxu0
        %1080 = vdwg.mxu0
        %v1081 = vadd.f32 %v924, %v1075
        %v1082 = vadd.f32 %v925, %v1078
        %v1083 = vld [vmem:[%s10] sm:$0x1]
        %v1084 = vld [vmem:[%s11] sm:$0x1]
        %v1085 = vsel %vm514, %v1081, 0.0
        %1086 = vadd.xlane.f32.xlu0 %v1085
        %v1087 = vpop.xlane.xlu0 %1086
        %v1088 = vsel %vm514, %v1082, 0.0
        %1089 = vadd.xlane.f32.xlu0 %v1088
        %v1090 = vpop.xlane.xlu0 %1089
        %v1091 = vmul.f32 %v1087, %v889
        %v1092 = vmul.f32 %v1090, %v889
        %v1093 = vsub.f32 %v1081, %v1091
        %v1094 = vsub.f32 %v1082, %v1092
        %v1095 = vmul.f32 %v1093, %v1093
        %v1096 = vmul.f32 %v1094, %v1094
        %v1097 = vsel %vm514, %v1095, 0.0
        %1098 = vadd.xlane.f32.xlu0 %v1097
        %v1099 = vpop.xlane.xlu0 %1098
        %v1100 = vsel %vm514, %v1096, 0.0
        %1101 = vadd.xlane.f32.xlu0 %v1100
        %v1102 = vpop.xlane.xlu0 %1101
        %v1103 = vmul.f32 %v1099, %v889
        %v1104 = vmul.f32 %v1102, %v889
        %v1105 = vadd.f32 %v1103, 1e-05
        %v1106 = vadd.f32 %v1104, 1e-05
        %v1107 = vrsqrt.pop %v1105
        %v1108 = vrsqrt.pop %v1106
        %v1109 = vmul.f32 %v1093, %v1107
        %v1110 = vmul.f32 %v1094, %v1108
        %v1112 = vlaneseq
        %v1113 = vshrl.u32 %v1112, 7
        %v1114 = vsub.s32 0, %v1113
        %v1115 = vrot.slane %v1083, %v1114
        %v1117 = vmul.f32 %v1109, %v1115
        %v1118 = vmul.f32 %v1110, %v1115
        %v1120 = vlaneseq
        %v1121 = vshrl.u32 %v1120, 7
        %v1122 = vsub.s32 0, %v1121
        %v1123 = vrot.slane %v1084, %v1122
        %v1125 = vadd.f32 %v1117, %v1123
        %v1126 = vadd.f32 %v1118, %v1123
        %1127 = vst.msk [vmem:[%s487] sm:$0xff] %vm514, %v1125
        %1128 = vst.msk [vmem:[%s487 + $0x8] sm:$0xff] %vm514, %v1126
        %s1129 = sand.u32 %s301, 1
        %s1130 = scalar_lea.sflag [#allocation4], %s1129
        %s1131 = sand.u32 %s301, 1
        %s1132 = smul.addr %s1131, 16
        %s1133 = scalar_lea.vmem [#allocation10], %s1132
        // Predicated region
        $region85: #{tpu_custom_call.1} parent=67 // pred_check
          %p1134 = pneg %p311
        $region86: #{tpu_custom_call.1} parent=67 // pred_check_branch
          %1136 = sbr.rel (%p1134) target = $region88
        $region87: #{tpu_custom_call.1} parent=67 // pred_region
          %s1138 = ssub.s32 256, 256
          %1139 = vsyncadd %s1130, %s1138
          %s1140 = smul.addr %s31, 2
          %s1141 = smul.addr %s1140, 128
          %s1142 = scalar_lea.hbm %s12, %s1141
          %s1143 = sshll.u32 %s1133, 4
          %s1144 = int_to_ptr.vmem [resolvable:$true] %s1143
          %1149 = dma.vmem_to_hbm [thread:$0]  %s1144, 256, %s1142, %s1130, 128, 128, 8
        $region88: #{tpu_custom_call.1} parent=67 // pred_fallthru
          _
      $region68: #{tpu_custom_call.1} parent=5 // pred_fallthru
        _
      %p1150 = scmp.le.s32.totalorder 2, %s26
      // Predicated region
      $region89: #{tpu_custom_call.1} parent=5 // pred_check
        %p1151 = pneg %p1150
      $region90: #{tpu_custom_call.1} parent=5 // pred_check_branch
        %1153 = sbr.rel (%p1151) target = $region92
      $region91: #{tpu_custom_call.1} parent=5 // pred_region
        %s1154 = ssub.s32 %s26, 2
        // Predicated region
        $region93: #{tpu_custom_call.1} parent=91 // pred_check
          %p1155 = pneg %p317
        $region94: #{tpu_custom_call.1} parent=91 // pred_check_branch
          %1157 = sbr.rel (%p1155) target = $region96
        $region95: #{tpu_custom_call.1} parent=91 // pred_region
          %s1158 = sand.u32 %s302, 1
          %s1159 = scalar_lea.sflag [#allocation4], %s1158
          %s1160 = sand.u32 %s302, 1
          %s1161 = smul.addr %s1160, 16
          %s1162 = scalar_lea.vmem [#allocation10], %s1161
          %1163 = dma.done %s1159, 256
        $region96: #{tpu_custom_call.1} parent=91 // pred_fallthru
          _
      $region92: #{tpu_custom_call.1} parent=5 // pred_fallthru
        _
    $region6: #{tpu_custom_call.1} parent=1 // loop_footer
      %s30 = sadd.s32 1, %s26
    $region7: #{tpu_custom_call.1} parent=1 // loop_footer_branch
      %25 = sbr.rel target = $region3
    $region8: #{tpu_custom_call.1} parent=1 // loop_exit
      _
    %1164 = vsyncpa [#allocation3], 1
    %s1165 = scalar_lea.sflag [#allocation3], 1
    %1166 = vsyncpa %s1165, 1
    %1167 = vsyncpa [#allocation6], 1
    %1168 = vsyncpa [#allocation9], 1
    %1169 = vsyncpa [#allocation4], 1
    %s1170 = scalar_lea.sflag [#allocation4], 1
    %1171 = vsyncpa %s1170, 1

</llo_original>
